<compile_context>
chip_gen: v7x
topology: tpu7x:2x2x1
jax: 0.10.0
libtpu: 0.0.40
codegen_flags: <defaults>
</compile_context>

<pallas_src>
import functools

import jax
import jax.numpy as jnp
from jax.experimental import pallas as pl
from jax.experimental.pallas import tpu as pltpu

LRELU_SLOPE = 0.2
BN_EPS = 1e-5
KS = 4          # kernel_size
PW = 1          # padding
LANE = 128      # TPU lane width


# ------------------------------ small helpers -------------------------------

def _round_up(x, m):
    return (x + m - 1) // m * m


def _pick_tile(dim, candidates):
    for c in candidates:
        if dim % c == 0:
            return c
    return dim


def _m_tiling(m):
    """Return (m_pad, tm): rows padded to a multiple of 8, tile <= 512."""
    m8 = _round_up(m, 8)
    if m8 <= 512:
        return m8, m8
    for t in (512, 256, 128):
        if m8 % t == 0:
            return m8, t
    return _round_up(m8, 128), 128


def _pad_to(a, rows, cols):
    r, c = a.shape
    if r == rows and c == cols:
        return a
    return jnp.pad(a, ((0, rows - r), (0, cols - c)))


def _pad_vec(v, n):
    v = v.astype(jnp.float32)
    if v.shape[0] == n:
        return v
    return jnp.pad(v, (0, n - v.shape[0]))


def _compiler_params(dim_sem):
    return pltpu.CompilerParams(dimension_semantics=dim_sem,
                                vmem_limit_bytes=32 * 1024 * 1024)


# ------------------------------ Pallas kernels -------------------------------

def _conv_mm_kernel(p_ref, w_ref, b_ref, o_ref, acc_ref, *, act):
    """Tiled conv-as-matmul: acc += (tm,tk)@(tk,tn); epilogue: +bias (+LReLU)."""
    k = pl.program_id(2)

    @pl.when(k == 0)
    def _():
        acc_ref[...] = jnp.zeros_like(acc_ref)

    acc_ref[...] += jnp.dot(p_ref[...], w_ref[...],
                            preferred_element_type=jnp.float32)

    @pl.when(k == pl.num_programs(2) - 1)
    def _():
        y = acc_ref[...] + b_ref[...]          # fp32 bias
        if act:
            y = jnp.where(y >= 0, y, LRELU_SLOPE * y)
        o_ref[...] = y.astype(o_ref.dtype)


def _conv_mm_bn_act_kernel(p_ref, w_ref, g_ref, bt_ref, o_ref, acc_ref, *,
                           m_real):
    """Fused conv + training-mode BatchNorm + LeakyReLU.

    Valid only when the whole (padded) M dimension lives in one M-tile, so the
    per-channel batch statistics are fully visible in the epilogue.  Padded
    rows of the patch tile are exactly zero (no bias), so they contribute zero
    to the channel sums; the mean/var divisor is the *real* row count m_real.
    """
    k = pl.program_id(2)

    @pl.when(k == 0)
    def _():
        acc_ref[...] = jnp.zeros_like(acc_ref)

    acc_ref[...] += jnp.dot(p_ref[...], w_ref[...],
                            preferred_element_type=jnp.float32)

    @pl.when(k == pl.num_programs(2) - 1)
    def _():
        acc = acc_ref[...]                                    # (tm, tn) fp32
        inv_m = 1.0 / float(m_real)
        mean = jnp.sum(acc, axis=0, keepdims=True) * inv_m    # (1, tn)
        var = jnp.sum(acc * acc, axis=0, keepdims=True) * inv_m - mean * mean
        scale = g_ref[...] * jax.lax.rsqrt(var + BN_EPS)      # gamma / std
        shift = bt_ref[...] - mean * scale                    # beta - mean*scale
        y = acc * scale + shift
        y = jnp.where(y >= 0, y, LRELU_SLOPE * y)
        o_ref[...] = y.astype(o_ref.dtype)


def _conv_mm_stats_kernel(p_ref, w_ref, o_ref, stats_ref, acc_ref):
    """Conv matmul for norm layers when M spans multiple tiles.

    Writes the pre-norm activation tile plus per-(M-tile, N-tile) channel
    sum / sum-of-squares so BatchNorm stats never re-read the slab from HBM.
    """
    k = pl.program_id(2)

    @pl.when(k == 0)
    def _():
        acc_ref[...] = jnp.zeros_like(acc_ref)

    acc_ref[...] += jnp.dot(p_ref[...], w_ref[...],
                            preferred_element_type=jnp.float32)

    @pl.when(k == pl.num_programs(2) - 1)
    def _():
        acc = acc_ref[...]
        o_ref[...] = acc.astype(o_ref.dtype)
        s1 = jnp.sum(acc, axis=0, keepdims=True)          # (1, tn)
        s2 = jnp.sum(acc * acc, axis=0, keepdims=True)    # (1, tn)
        stats_ref[0] = jnp.concatenate([s1, s2], axis=0)  # (2, tn)


def _bn_act_kernel(x_ref, scale_ref, shift_ref, o_ref):
    """y = x*scale + shift (pre-folded BN affine) then LeakyReLU(0.2)."""
    x = x_ref[...].astype(jnp.float32)
    y = x * scale_ref[...] + shift_ref[...]
    o_ref[...] = jnp.where(y >= 0, y, LRELU_SLOPE * y).astype(o_ref.dtype)


# ------------------------------ layer wrappers -------------------------------

def im2col_nhwc(x, ks, stride, pad):
    """x: (N,H,W,C) -> patches (N*OH*OW, ks*ks*C), ordered (kh, kw, cin)."""
    x = jnp.pad(x, ((0, 0), (pad, pad), (pad, pad), (0, 0)))
    N, H, W, C = x.shape
    OH = (H - ks) // stride + 1
    OW = (W - ks) // stride + 1
    cols = []
    for i in range(ks):
        for j in range(ks):
            cols.append(x[:, i:i + stride * OH:stride, j:j + stride * OW:stride, :])
    p = jnp.stack(cols, axis=3)                  # (N, OH, OW, ks*ks, C)
    return p.reshape(N * OH * OW, ks * ks * C), N, OH, OW


def _bn_act(y_pad, scale, shift, tm, tn):
    m_pad, c_pad = y_pad.shape
    grid = (m_pad // tm, c_pad // tn)
    return pl.pallas_call(
        _bn_act_kernel,
        out_shape=jax.ShapeDtypeStruct((m_pad, c_pad), y_pad.dtype),
        grid_spec=pltpu.PrefetchScalarGridSpec(
            num_scalar_prefetch=0, grid=grid,
            in_specs=[pl.BlockSpec((tm, tn), lambda i, j: (i, j)),
                      pl.BlockSpec((1, tn), lambda i, j: (0, j)),
                      pl.BlockSpec((1, tn), lambda i, j: (0, j))],
            out_specs=pl.BlockSpec((tm, tn), lambda i, j: (i, j))),
        compiler_params=_compiler_params(("parallel", "parallel")),
    )(y_pad,
      scale.reshape(1, c_pad).astype(jnp.float32),
      shift.reshape(1, c_pad).astype(jnp.float32))


def conv_layer(x, layer, out_dtype):
    """One Conv2d(ks=4) [+ BatchNorm] [+ LeakyReLU] layer on NHWC input."""
    w = layer["w"]                               # (Cout, Cin, KH, KW) fp32
    cout = w.shape[0]
    stride = layer["stride"]

    patches, n, oh, ow = im2col_nhwc(x, KS, stride, PW)   # (M, K)
    m, kdim = patches.shape

    # Padded, lane-dense problem sizes and tile selection.
    m_pad, tm = _m_tiling(m)
    k_pad = _round_up(kdim, LANE)
    c_pad = _round_up(cout, LANE)
    tk = _pick_tile(k_pad, (512, 256, 128))
    tn = 256 if c_pad % 256 == 0 else 128
    grid = (m_pad // tm, c_pad // tn, k_pad // tk)

    # bf16 MXU operands (zero padding keeps the matmul exact for real rows).
    patches_p = _pad_to(patches, m_pad, k_pad).astype(jnp.bfloat16)
    w2d = jnp.transpose(w, (2, 3, 1, 0)).reshape(-1, cout)   # (KH*KW*Cin, Cout)
    w2d_p = _pad_to(w2d, k_pad, c_pad).astype(jnp.bfloat16)

    out_bytes = jnp.dtype(out_dtype).itemsize
    cost = pl.CostEstimate(
        flops=2 * m_pad * k_pad * c_pad,
        transcendentals=0,
        bytes_accessed=2 * (m_pad * k_pad + k_pad * c_pad)
                       + out_bytes * m_pad * c_pad)

    p_spec = pl.BlockSpec((tm, tk), lambda i, j, kk: (i, kk))
    w_spec = pl.BlockSpec((tk, tn), lambda i, j, kk: (kk, j))
    vec_spec = pl.BlockSpec((1, tn), lambda i, j, kk: (0, j))
    out_spec = pl.BlockSpec((tm, tn), lambda i, j, kk: (i, j))
    acc_scratch = [pltpu.VMEM((tm, tn), jnp.float32)]
    cparams = _compiler_params(("parallel", "parallel", "arbitrary"))

    if layer["bn"]:
        gamma = _pad_vec(layer["gamma"], c_pad).reshape(1, c_pad)
        beta = _pad_vec(layer["beta"], c_pad).reshape(1, c_pad)

        if grid[0] == 1:
            # Single M-tile: full batch statistics are visible in the matmul
            # epilogue -> fuse conv + BN + LeakyReLU into one kernel / one
            # HBM pass (this is the path taken for the demo config).
            y_pad = pl.pallas_call(
                functools.partial(_conv_mm_bn_act_kernel, m_real=m),
                out_shape=jax.ShapeDtypeStruct((m_pad, c_pad), out_dtype),
                grid_spec=pltpu.PrefetchScalarGridSpec(
                    num_scalar_prefetch=0, grid=grid,
                    in_specs=[p_spec, w_spec, vec_spec, vec_spec],
                    out_specs=out_spec,
                    scratch_shapes=acc_scratch),
                compiler_params=cparams, cost_estimate=cost,
            )(patches_p, w2d_p, gamma, beta)
        else:
            # Multiple M-tiles: two-pass BN. Conv kernel emits per-tile
            # channel partials; tiny reduction in XLA; light apply kernel.
            nm = grid[0]
            y_pad, stats = pl.pallas_call(
                _conv_mm_stats_kernel,
                out_shape=(jax.ShapeDtypeStruct((m_pad, c_pad), out_dtype),
                           jax.ShapeDtypeStruct((nm, 2, c_pad), jnp.float32)),
                grid_spec=pltpu.PrefetchScalarGridSpec(
                    num_scalar_prefetch=0, grid=grid,
                    in_specs=[p_spec, w_spec],
                    out_specs=(out_spec,
                               pl.BlockSpec((1, 2, tn),
                                            lambda i, j, kk: (i, 0, j))),
                    scratch_shapes=acc_scratch),
                compiler_params=cparams, cost_estimate=cost,
            )(patches_p, w2d_p)

            # Padded rows/channels are exactly zero (no bias) -> contribute 0.
            s = jnp.sum(stats, axis=0)                     # (2, c_pad) fp32
            mean = s[0] / float(m)
            var = s[1] / float(m) - mean * mean            # biased (training BN)
            scale = gamma[0] * jax.lax.rsqrt(var + BN_EPS)
            shift = beta[0] - mean * scale
            y_pad = _bn_act(y_pad, scale, shift, tm, tn)
    else:
        bias = _pad_vec(layer["b"], c_pad).reshape(1, c_pad)
        y_pad = pl.pallas_call(
            functools.partial(_conv_mm_kernel, act=layer["lrelu"]),
            out_shape=jax.ShapeDtypeStruct((m_pad, c_pad), out_dtype),
            grid_spec=pltpu.PrefetchScalarGridSpec(
                num_scalar_prefetch=0, grid=grid,
                in_specs=[p_spec, w_spec, vec_spec],
                out_specs=out_spec,
                scratch_shapes=acc_scratch),
            compiler_params=cparams, cost_estimate=cost,
        )(patches_p, w2d_p, bias)

    y = y_pad[:m, :cout]                     # drop row/lane padding
    return y.reshape(n, oh, ow, cout)


# --------------------------------- model -------------------------------------

def init_params(key, inp_nc, ndf, nlayers_d):
    """Deterministic synthetic parameters; shapes follow NLayerDNet.__init__."""
    keys = iter(jax.random.split(key, 4 * (nlayers_d + 3)))

    def conv_w(cin, cout):
        return jax.random.normal(next(keys), (cout, cin, KS, KS), jnp.float32) * 0.05

    layers = []
    # First conv: stride 2, bias=True, LeakyReLU, no norm.
    layers.append(dict(w=conv_w(inp_nc, ndf),
                       b=jax.random.normal(next(keys), (ndf,), jnp.float32) * 0.05,
                       stride=2, bn=False, lrelu=True))
    mult_prev = 1
    mult = 1
    for i in range(1, nlayers_d):
        mult = min(2 ** i, 8)
        c = ndf * mult
        layers.append(dict(w=conv_w(ndf * mult_prev, c),
                           stride=2, bn=True, lrelu=True,
                           gamma=jnp.ones((c,), jnp.float32),     # BN default init
                           beta=jnp.zeros((c,), jnp.float32)))
        mult_prev = mult
    mult_prev = mult
    mult = min(2 ** nlayers_d, 8)
    c = ndf * mult
    layers.append(dict(w=conv_w(ndf * mult_prev, c),
                       stride=1, bn=True, lrelu=True,
                       gamma=jnp.ones((c,), jnp.float32),
                       beta=jnp.zeros((c,), jnp.float32)))
    # Final conv -> 1 channel, stride 1, bias=True, no activation.
    layers.append(dict(w=conv_w(c, 1),
                       b=jax.random.normal(next(keys), (1,), jnp.float32) * 0.05,
                       stride=1, bn=False, lrelu=False))
    return layers


def nlayer_dnet_forward(x_nchw, layers):
    x = jnp.transpose(x_nchw, (0, 2, 3, 1)).astype(jnp.bfloat16)   # NCHW -> NHWC
    for idx, layer in enumerate(layers):
        is_final = idx == len(layers) - 1
        x = conv_layer(x, layer,
                       out_dtype=jnp.float32 if is_final else jnp.bfloat16)
    return jnp.transpose(x, (0, 3, 1, 2))                          # NHWC -> NCHW


# --------------------------------- main ---------------------------------------

if __name__ == "__main__":
    key = jax.random.PRNGKey(0)
    kx, kp = jax.random.split(key)

    # cfg.ndf = 8, cfg.nlayers_d = 2, inp_nc = 4; input (2, 4, 16, 16)
    inp_nc, ndf, nlayers_d = 4, 8, 2
    x = jax.random.normal(kx, (2, inp_nc, 16, 16), jnp.float32)
    layers = init_params(kp, inp_nc, ndf, nlayers_d)

    fwd = jax.jit(lambda inp: nlayer_dnet_forward(inp, layers))
    out = fwd(x)
    jax.block_until_ready(out)

    # 16 -> 8 -> 4 -> 3 -> 2 spatially; 1 output channel (PatchGAN logits).
    assert out.shape == (2, 1, 2, 2), out.shape
    assert out.dtype == jnp.float32
    print("KERNEL_OK")
</pallas_src>

<mosaic_0001>
module attributes {stable_mosaic.version = 11 : i64} {
  func.func @_conv_mm_kernel(%arg0: i32, %arg1: i32, %arg2: i32, %arg3: memref<128x128xbf16, #tpu.memory_space<vmem>>, %arg4: memref<128x128xbf16, #tpu.memory_space<vmem>>, %arg5: memref<1x128xf32, #tpu.memory_space<vmem>>, %arg6: memref<128x128xbf16, #tpu.memory_space<vmem>>, %arg7: memref<128x128xf32, #tpu.memory_space<vmem>>) attributes {dimension_semantics = [#tpu.dimension_semantics<parallel>, #tpu.dimension_semantics<parallel>, #tpu.dimension_semantics<arbitrary>], iteration_bounds = array<i64: 1, 1, 1>, scalar_prefetch = 0 : i64, scratch_operands = 1 : i64, tpu.core_type = #tpu.core_type<tc>, window_params = [{transform_indices = @transform_0, window_bounds = array<i64: 128, 128>}, {transform_indices = @transform_1, window_bounds = array<i64: 128, 128>}, {transform_indices = @transform_2, window_bounds = array<i64: 1, 128>}, {transform_indices = @transform_3, window_bounds = array<i64: 128, 128>}]} {
    %c0_i32 = arith.constant 0 : i32
    %0 = arith.cmpi eq, %arg2, %c0_i32 : i32
    %1 = arith.extui %0 : i1 to i32
    %c0_i32_0 = arith.constant 0 : i32
    %2 = arith.cmpi ne, %1, %c0_i32_0 : i32
    scf.if %2 {
      %cst_10 = arith.constant 0.000000e+00 : f32
      %12 = vector.broadcast %cst_10 : f32 to vector<128x128xf32>
      %c0_11 = arith.constant 0 : index
      %c0_12 = arith.constant 0 : index
      %13 = vector.load %arg7[%c0_11, %c0_12] : memref<128x128xf32, #tpu.memory_space<vmem>>, vector<128x128xf32>
      tpu.vector_store %arg7[%c0_11, %c0_12], %12 {strides = array<i32>} : memref<128x128xf32, #tpu.memory_space<vmem>>, vector<128x128xf32>,
    } else {
    }
    %c0 = arith.constant 0 : index
    %c0_1 = arith.constant 0 : index
    %3 = vector.load %arg7[%c0, %c0_1] : memref<128x128xf32, #tpu.memory_space<vmem>>, vector<128x128xf32>
    %c0_2 = arith.constant 0 : index
    %c0_3 = arith.constant 0 : index
    %4 = vector.load %arg3[%c0_2, %c0_3] : memref<128x128xbf16, #tpu.memory_space<vmem>>, vector<128x128xbf16>
    %c0_4 = arith.constant 0 : index
    %c0_5 = arith.constant 0 : index
    %5 = vector.load %arg4[%c0_4, %c0_5] : memref<128x128xbf16, #tpu.memory_space<vmem>>, vector<128x128xbf16>
    %cst = arith.constant dense<0.000000e+00> : vector<128x128xf32>
    %6 = tpu.matmul %4, %5, %cst {dimension_numbers = #tpu.dot_dimension_numbers<[1], [0], [0], [1], [0, 0, 1, 1], [], []>} : vector<128x128xbf16>, vector<128x128xbf16>, vector<128x128xf32> -> vector<128x128xf32>
    %7 = arith.addf %3, %6 : vector<128x128xf32>
    %c0_6 = arith.constant 0 : index
    %c0_7 = arith.constant 0 : index
    %8 = vector.load %arg7[%c0_6, %c0_7] : memref<128x128xf32, #tpu.memory_space<vmem>>, vector<128x128xf32>
    tpu.vector_store %arg7[%c0_6, %c0_7], %7 {strides = array<i32>} : memref<128x128xf32, #tpu.memory_space<vmem>>, vector<128x128xf32>,
    %c0_i32_8 = arith.constant 0 : i32
    %9 = arith.cmpi eq, %arg2, %c0_i32_8 : i32
    %10 = arith.extui %9 : i1 to i32
    %c0_i32_9 = arith.constant 0 : i32
    %11 = arith.cmpi ne, %10, %c0_i32_9 : i32
    scf.if %11 {
      %c0_10 = arith.constant 0 : index
      %c0_11 = arith.constant 0 : index
      %12 = vector.load %arg7[%c0_10, %c0_11] : memref<128x128xf32, #tpu.memory_space<vmem>>, vector<128x128xf32>
      %c0_12 = arith.constant 0 : index
      %c0_13 = arith.constant 0 : index
      %13 = vector.load %arg5[%c0_12, %c0_13] : memref<1x128xf32, #tpu.memory_space<vmem>>, vector<1x128xf32>
      %14 = vector.broadcast %13 : vector<1x128xf32> to vector<128x128xf32>
      %15 = arith.addf %12, %14 : vector<128x128xf32>
      %cst_14 = arith.constant 0.000000e+00 : f32
      %16 = vector.broadcast %cst_14 : f32 to vector<128x128xf32>
      %17 = arith.cmpf oge, %15, %16 : vector<128x128xf32>
      %cst_15 = arith.constant 2.000000e-01 : f32
      %18 = vector.broadcast %cst_15 : f32 to vector<128x128xf32>
      %19 = arith.mulf %18, %15 : vector<128x128xf32>
      %20 = arith.select %17, %15, %19 : vector<128x128xi1>, vector<128x128xf32>
      %21 = arith.truncf %20 : vector<128x128xf32> to vector<128x128xbf16>
      %c0_16 = arith.constant 0 : index
      %c0_17 = arith.constant 0 : index
      %22 = vector.load %arg6[%c0_16, %c0_17] : memref<128x128xbf16, #tpu.memory_space<vmem>>, vector<128x128xbf16>
      tpu.vector_store %arg6[%c0_16, %c0_17], %21 {strides = array<i32>} : memref<128x128xbf16, #tpu.memory_space<vmem>>, vector<128x128xbf16>,
    } else {
    }
    return
  }
  func.func @transform_0(%arg0: i32, %arg1: i32, %arg2: i32) -> (i32, i32) {
    %c0_i32 = arith.constant 0 : i32
    return %arg0, %arg2 : i32, i32
  }
  func.func @transform_1(%arg0: i32, %arg1: i32, %arg2: i32) -> (i32, i32) {
    %c0_i32 = arith.constant 0 : i32
    return %arg2, %arg1 : i32, i32
  }
  func.func @transform_2(%arg0: i32, %arg1: i32, %arg2: i32) -> (i32, i32) {
    %c0_i32 = arith.constant 0 : i32
    %c0_i32_0 = arith.constant 0 : i32
    return %c0_i32, %arg1 : i32, i32
  }
  func.func @transform_3(%arg0: i32, %arg1: i32, %arg2: i32) -> (i32, i32) {
    %c0_i32 = arith.constant 0 : i32
    return %arg0, %arg1 : i32, i32
  }
}

module attributes {stable_mosaic.version = 11 : i64} {
  func.func @_conv_mm_bn_act_kernel(%arg0: i32, %arg1: i32, %arg2: i32, %arg3: memref<32x128xbf16, #tpu.memory_space<vmem>>, %arg4: memref<128x128xbf16, #tpu.memory_space<vmem>>, %arg5: memref<1x128xf32, #tpu.memory_space<vmem>>, %arg6: memref<1x128xf32, #tpu.memory_space<vmem>>, %arg7: memref<32x128xbf16, #tpu.memory_space<vmem>>, %arg8: memref<32x128xf32, #tpu.memory_space<vmem>>) attributes {dimension_semantics = [#tpu.dimension_semantics<parallel>, #tpu.dimension_semantics<parallel>, #tpu.dimension_semantics<arbitrary>], iteration_bounds = array<i64: 1, 1, 1>, scalar_prefetch = 0 : i64, scratch_operands = 1 : i64, tpu.core_type = #tpu.core_type<tc>, window_params = [{transform_indices = @transform_0, window_bounds = array<i64: 32, 128>}, {transform_indices = @transform_1, window_bounds = array<i64: 128, 128>}, {transform_indices = @transform_2, window_bounds = array<i64: 1, 128>}, {transform_indices = @transform_3, window_bounds = array<i64: 1, 128>}, {transform_indices = @transform_4, window_bounds = array<i64: 32, 128>}]} {
    %c0_i32 = arith.constant 0 : i32
    %0 = arith.cmpi eq, %arg2, %c0_i32 : i32
    %1 = arith.extui %0 : i1 to i32
    %c0_i32_0 = arith.constant 0 : i32
    %2 = arith.cmpi ne, %1, %c0_i32_0 : i32
    scf.if %2 {
      %cst_10 = arith.constant 0.000000e+00 : f32
      %12 = vector.broadcast %cst_10 : f32 to vector<32x128xf32>
      %c0_11 = arith.constant 0 : index
      %c0_12 = arith.constant 0 : index
      %13 = vector.load %arg8[%c0_11, %c0_12] : memref<32x128xf32, #tpu.memory_space<vmem>>, vector<32x128xf32>
      tpu.vector_store %arg8[%c0_11, %c0_12], %12 {strides = array<i32>} : memref<32x128xf32, #tpu.memory_space<vmem>>, vector<32x128xf32>,
    } else {
    }
    %c0 = arith.constant 0 : index
    %c0_1 = arith.constant 0 : index
    %3 = vector.load %arg8[%c0, %c0_1] : memref<32x128xf32, #tpu.memory_space<vmem>>, vector<32x128xf32>
    %c0_2 = arith.constant 0 : index
    %c0_3 = arith.constant 0 : index
    %4 = vector.load %arg3[%c0_2, %c0_3] : memref<32x128xbf16, #tpu.memory_space<vmem>>, vector<32x128xbf16>
    %c0_4 = arith.constant 0 : index
    %c0_5 = arith.constant 0 : index
    %5 = vector.load %arg4[%c0_4, %c0_5] : memref<128x128xbf16, #tpu.memory_space<vmem>>, vector<128x128xbf16>
    %cst = arith.constant dense<0.000000e+00> : vector<32x128xf32>
    %6 = tpu.matmul %4, %5, %cst {dimension_numbers = #tpu.dot_dimension_numbers<[1], [0], [0], [1], [0, 0, 1, 1], [], []>} : vector<32x128xbf16>, vector<128x128xbf16>, vector<32x128xf32> -> vector<32x128xf32>
    %7 = arith.addf %3, %6 : vector<32x128xf32>
    %c0_6 = arith.constant 0 : index
    %c0_7 = arith.constant 0 : index
    %8 = vector.load %arg8[%c0_6, %c0_7] : memref<32x128xf32, #tpu.memory_space<vmem>>, vector<32x128xf32>
    tpu.vector_store %arg8[%c0_6, %c0_7], %7 {strides = array<i32>} : memref<32x128xf32, #tpu.memory_space<vmem>>, vector<32x128xf32>,
    %c0_i32_8 = arith.constant 0 : i32
    %9 = arith.cmpi eq, %arg2, %c0_i32_8 : i32
    %10 = arith.extui %9 : i1 to i32
    %c0_i32_9 = arith.constant 0 : i32
    %11 = arith.cmpi ne, %10, %c0_i32_9 : i32
    scf.if %11 {
      %c0_10 = arith.constant 0 : index
      %c0_11 = arith.constant 0 : index
      %12 = vector.load %arg8[%c0_10, %c0_11] : memref<32x128xf32, #tpu.memory_space<vmem>>, vector<32x128xf32>
      %cst_12 = arith.constant dense<0.000000e+00> : vector<128xf32>
      %13 = vector.multi_reduction <add>, %12, %cst_12 [0] : vector<32x128xf32> to vector<128xf32>
      %14 = vector.shape_cast %13 : vector<128xf32> to vector<1x128xf32>
      %cst_13 = arith.constant 3.125000e-02 : f32
      %15 = vector.broadcast %cst_13 : f32 to vector<1x128xf32>
      %16 = arith.mulf %14, %15 : vector<1x128xf32>
      %17 = arith.mulf %12, %12 : vector<32x128xf32>
      %cst_14 = arith.constant dense<0.000000e+00> : vector<128xf32>
      %18 = vector.multi_reduction <add>, %17, %cst_14 [0] : vector<32x128xf32> to vector<128xf32>
      %19 = vector.shape_cast %18 : vector<128xf32> to vector<1x128xf32>
      %cst_15 = arith.constant 3.125000e-02 : f32
      %20 = vector.broadcast %cst_15 : f32 to vector<1x128xf32>
      %21 = arith.mulf %19, %20 : vector<1x128xf32>
      %22 = arith.mulf %16, %16 : vector<1x128xf32>
      %23 = arith.subf %21, %22 : vector<1x128xf32>
      %c0_16 = arith.constant 0 : index
      %c0_17 = arith.constant 0 : index
      %24 = vector.load %arg5[%c0_16, %c0_17] : memref<1x128xf32, #tpu.memory_space<vmem>>, vector<1x128xf32>
      %cst_18 = arith.constant 9.99999974E-6 : f32
      %25 = vector.broadcast %cst_18 : f32 to vector<1x128xf32>
      %26 = arith.addf %23, %25 : vector<1x128xf32>
      %27 = math.rsqrt %26 : vector<1x128xf32>
      %28 = arith.mulf %24, %27 : vector<1x128xf32>
      %c0_19 = arith.constant 0 : index
      %c0_20 = arith.constant 0 : index
      %29 = vector.load %arg6[%c0_19, %c0_20] : memref<1x128xf32, #tpu.memory_space<vmem>>, vector<1x128xf32>
      %30 = arith.mulf %16, %28 : vector<1x128xf32>
      %31 = arith.subf %29, %30 : vector<1x128xf32>
      %32 = vector.broadcast %28 : vector<1x128xf32> to vector<32x128xf32>
      %33 = arith.mulf %12, %32 : vector<32x128xf32>
      %34 = vector.broadcast %31 : vector<1x128xf32> to vector<32x128xf32>
      %35 = arith.addf %33, %34 : vector<32x128xf32>
      %cst_21 = arith.constant 0.000000e+00 : f32
      %36 = vector.broadcast %cst_21 : f32 to vector<32x128xf32>
      %37 = arith.cmpf oge, %35, %36 : vector<32x128xf32>
      %cst_22 = arith.constant 2.000000e-01 : f32
      %38 = vector.broadcast %cst_22 : f32 to vector<32x128xf32>
      %39 = arith.mulf %38, %35 : vector<32x128xf32>
      %40 = arith.select %37, %35, %39 : vector<32x128xi1>, vector<32x128xf32>
      %41 = arith.truncf %40 : vector<32x128xf32> to vector<32x128xbf16>
      %c0_23 = arith.constant 0 : index
      %c0_24 = arith.constant 0 : index
      %42 = vector.load %arg7[%c0_23, %c0_24] : memref<32x128xbf16, #tpu.memory_space<vmem>>, vector<32x128xbf16>
      tpu.vector_store %arg7[%c0_23, %c0_24], %41 {strides = array<i32>} : memref<32x128xbf16, #tpu.memory_space<vmem>>, vector<32x128xbf16>,
    } else {
    }
    return
  }
  func.func @transform_0(%arg0: i32, %arg1: i32, %arg2: i32) -> (i32, i32) {
    %c0_i32 = arith.constant 0 : i32
    return %arg0, %arg2 : i32, i32
  }
  func.func @transform_1(%arg0: i32, %arg1: i32, %arg2: i32) -> (i32, i32) {
    %c0_i32 = arith.constant 0 : i32
    return %arg2, %arg1 : i32, i32
  }
  func.func @transform_2(%arg0: i32, %arg1: i32, %arg2: i32) -> (i32, i32) {
    %c0_i32 = arith.constant 0 : i32
    %c0_i32_0 = arith.constant 0 : i32
    return %c0_i32, %arg1 : i32, i32
  }
  func.func @transform_3(%arg0: i32, %arg1: i32, %arg2: i32) -> (i32, i32) {
    %c0_i32 = arith.constant 0 : i32
    %c0_i32_0 = arith.constant 0 : i32
    return %c0_i32, %arg1 : i32, i32
  }
  func.func @transform_4(%arg0: i32, %arg1: i32, %arg2: i32) -> (i32, i32) {
    %c0_i32 = arith.constant 0 : i32
    return %arg0, %arg1 : i32, i32
  }
}

module attributes {stable_mosaic.version = 11 : i64} {
  func.func @_conv_mm_bn_act_kernel(%arg0: i32, %arg1: i32, %arg2: i32, %arg3: memref<24x256xbf16, #tpu.memory_space<vmem>>, %arg4: memref<256x128xbf16, #tpu.memory_space<vmem>>, %arg5: memref<1x128xf32, #tpu.memory_space<vmem>>, %arg6: memref<1x128xf32, #tpu.memory_space<vmem>>, %arg7: memref<24x128xbf16, #tpu.memory_space<vmem>>, %arg8: memref<24x128xf32, #tpu.memory_space<vmem>>) attributes {dimension_semantics = [#tpu.dimension_semantics<parallel>, #tpu.dimension_semantics<parallel>, #tpu.dimension_semantics<arbitrary>], iteration_bounds = array<i64: 1, 1, 1>, scalar_prefetch = 0 : i64, scratch_operands = 1 : i64, tpu.core_type = #tpu.core_type<tc>, window_params = [{transform_indices = @transform_0, window_bounds = array<i64: 24, 256>}, {transform_indices = @transform_1, window_bounds = array<i64: 256, 128>}, {transform_indices = @transform_2, window_bounds = array<i64: 1, 128>}, {transform_indices = @transform_3, window_bounds = array<i64: 1, 128>}, {transform_indices = @transform_4, window_bounds = array<i64: 24, 128>}]} {
    %c0_i32 = arith.constant 0 : i32
    %0 = arith.cmpi eq, %arg2, %c0_i32 : i32
    %1 = arith.extui %0 : i1 to i32
    %c0_i32_0 = arith.constant 0 : i32
    %2 = arith.cmpi ne, %1, %c0_i32_0 : i32
    scf.if %2 {
      %cst_10 = arith.constant 0.000000e+00 : f32
      %12 = vector.broadcast %cst_10 : f32 to vector<24x128xf32>
      %c0_11 = arith.constant 0 : index
      %c0_12 = arith.constant 0 : index
      %13 = vector.load %arg8[%c0_11, %c0_12] : memref<24x128xf32, #tpu.memory_space<vmem>>, vector<24x128xf32>
      tpu.vector_store %arg8[%c0_11, %c0_12], %12 {strides = array<i32>} : memref<24x128xf32, #tpu.memory_space<vmem>>, vector<24x128xf32>,
    } else {
    }
    %c0 = arith.constant 0 : index
    %c0_1 = arith.constant 0 : index
    %3 = vector.load %arg8[%c0, %c0_1] : memref<24x128xf32, #tpu.memory_space<vmem>>, vector<24x128xf32>
    %c0_2 = arith.constant 0 : index
    %c0_3 = arith.constant 0 : index
    %4 = vector.load %arg3[%c0_2, %c0_3] : memref<24x256xbf16, #tpu.memory_space<vmem>>, vector<24x256xbf16>
    %c0_4 = arith.constant 0 : index
    %c0_5 = arith.constant 0 : index
    %5 = vector.load %arg4[%c0_4, %c0_5] : memref<256x128xbf16, #tpu.memory_space<vmem>>, vector<256x128xbf16>
    %cst = arith.constant dense<0.000000e+00> : vector<24x128xf32>
    %6 = tpu.matmul %4, %5, %cst {dimension_numbers = #tpu.dot_dimension_numbers<[1], [0], [0], [1], [0, 0, 1, 1], [], []>} : vector<24x256xbf16>, vector<256x128xbf16>, vector<24x128xf32> -> vector<24x128xf32>
    %7 = arith.addf %3, %6 : vector<24x128xf32>
    %c0_6 = arith.constant 0 : index
    %c0_7 = arith.constant 0 : index
    %8 = vector.load %arg8[%c0_6, %c0_7] : memref<24x128xf32, #tpu.memory_space<vmem>>, vector<24x128xf32>
    tpu.vector_store %arg8[%c0_6, %c0_7], %7 {strides = array<i32>} : memref<24x128xf32, #tpu.memory_space<vmem>>, vector<24x128xf32>,
    %c0_i32_8 = arith.constant 0 : i32
    %9 = arith.cmpi eq, %arg2, %c0_i32_8 : i32
    %10 = arith.extui %9 : i1 to i32
    %c0_i32_9 = arith.constant 0 : i32
    %11 = arith.cmpi ne, %10, %c0_i32_9 : i32
    scf.if %11 {
      %c0_10 = arith.constant 0 : index
      %c0_11 = arith.constant 0 : index
      %12 = vector.load %arg8[%c0_10, %c0_11] : memref<24x128xf32, #tpu.memory_space<vmem>>, vector<24x128xf32>
      %cst_12 = arith.constant dense<0.000000e+00> : vector<128xf32>
      %13 = vector.multi_reduction <add>, %12, %cst_12 [0] : vector<24x128xf32> to vector<128xf32>
      %14 = vector.shape_cast %13 : vector<128xf32> to vector<1x128xf32>
      %cst_13 = arith.constant 0.055555556 : f32
      %15 = vector.broadcast %cst_13 : f32 to vector<1x128xf32>
      %16 = arith.mulf %14, %15 : vector<1x128xf32>
      %17 = arith.mulf %12, %12 : vector<24x128xf32>
      %cst_14 = arith.constant dense<0.000000e+00> : vector<128xf32>
      %18 = vector.multi_reduction <add>, %17, %cst_14 [0] : vector<24x128xf32> to vector<128xf32>
      %19 = vector.shape_cast %18 : vector<128xf32> to vector<1x128xf32>
      %cst_15 = arith.constant 0.055555556 : f32
      %20 = vector.broadcast %cst_15 : f32 to vector<1x128xf32>
      %21 = arith.mulf %19, %20 : vector<1x128xf32>
      %22 = arith.mulf %16, %16 : vector<1x128xf32>
      %23 = arith.subf %21, %22 : vector<1x128xf32>
      %c0_16 = arith.constant 0 : index
      %c0_17 = arith.constant 0 : index
      %24 = vector.load %arg5[%c0_16, %c0_17] : memref<1x128xf32, #tpu.memory_space<vmem>>, vector<1x128xf32>
      %cst_18 = arith.constant 9.99999974E-6 : f32
      %25 = vector.broadcast %cst_18 : f32 to vector<1x128xf32>
      %26 = arith.addf %23, %25 : vector<1x128xf32>
      %27 = math.rsqrt %26 : vector<1x128xf32>
      %28 = arith.mulf %24, %27 : vector<1x128xf32>
      %c0_19 = arith.constant 0 : index
      %c0_20 = arith.constant 0 : index
      %29 = vector.load %arg6[%c0_19, %c0_20] : memref<1x128xf32, #tpu.memory_space<vmem>>, vector<1x128xf32>
      %30 = arith.mulf %16, %28 : vector<1x128xf32>
      %31 = arith.subf %29, %30 : vector<1x128xf32>
      %32 = vector.broadcast %28 : vector<1x128xf32> to vector<24x128xf32>
      %33 = arith.mulf %12, %32 : vector<24x128xf32>
      %34 = vector.broadcast %31 : vector<1x128xf32> to vector<24x128xf32>
      %35 = arith.addf %33, %34 : vector<24x128xf32>
      %cst_21 = arith.constant 0.000000e+00 : f32
      %36 = vector.broadcast %cst_21 : f32 to vector<24x128xf32>
      %37 = arith.cmpf oge, %35, %36 : vector<24x128xf32>
      %cst_22 = arith.constant 2.000000e-01 : f32
      %38 = vector.broadcast %cst_22 : f32 to vector<24x128xf32>
      %39 = arith.mulf %38, %35 : vector<24x128xf32>
      %40 = arith.select %37, %35, %39 : vector<24x128xi1>, vector<24x128xf32>
      %41 = arith.truncf %40 : vector<24x128xf32> to vector<24x128xbf16>
      %c0_23 = arith.constant 0 : index
      %c0_24 = arith.constant 0 : index
      %42 = vector.load %arg7[%c0_23, %c0_24] : memref<24x128xbf16, #tpu.memory_space<vmem>>, vector<24x128xbf16>
      tpu.vector_store %arg7[%c0_23, %c0_24], %41 {strides = array<i32>} : memref<24x128xbf16, #tpu.memory_space<vmem>>, vector<24x128xbf16>,
    } else {
    }
    return
  }
  func.func @transform_0(%arg0: i32, %arg1: i32, %arg2: i32) -> (i32, i32) {
    %c0_i32 = arith.constant 0 : i32
    return %arg0, %arg2 : i32, i32
  }
  func.func @transform_1(%arg0: i32, %arg1: i32, %arg2: i32) -> (i32, i32) {
    %c0_i32 = arith.constant 0 : i32
    return %arg2, %arg1 : i32, i32
  }
  func.func @transform_2(%arg0: i32, %arg1: i32, %arg2: i32) -> (i32, i32) {
    %c0_i32 = arith.constant 0 : i32
    %c0_i32_0 = arith.constant 0 : i32
    return %c0_i32, %arg1 : i32, i32
  }
  func.func @transform_3(%arg0: i32, %arg1: i32, %arg2: i32) -> (i32, i32) {
    %c0_i32 = arith.constant 0 : i32
    %c0_i32_0 = arith.constant 0 : i32
    return %c0_i32, %arg1 : i32, i32
  }
  func.func @transform_4(%arg0: i32, %arg1: i32, %arg2: i32) -> (i32, i32) {
    %c0_i32 = arith.constant 0 : i32
    return %arg0, %arg1 : i32, i32
  }
}

module attributes {stable_mosaic.version = 11 : i64} {
  func.func @_conv_mm_kernel(%arg0: i32, %arg1: i32, %arg2: i32, %arg3: memref<8x512xbf16, #tpu.memory_space<vmem>>, %arg4: memref<512x128xbf16, #tpu.memory_space<vmem>>, %arg5: memref<1x128xf32, #tpu.memory_space<vmem>>, %arg6: memref<8x128xf32, #tpu.memory_space<vmem>>, %arg7: memref<8x128xf32, #tpu.memory_space<vmem>>) attributes {dimension_semantics = [#tpu.dimension_semantics<parallel>, #tpu.dimension_semantics<parallel>, #tpu.dimension_semantics<arbitrary>], iteration_bounds = array<i64: 1, 1, 1>, scalar_prefetch = 0 : i64, scratch_operands = 1 : i64, tpu.core_type = #tpu.core_type<tc>, window_params = [{transform_indices = @transform_0, window_bounds = array<i64: 8, 512>}, {transform_indices = @transform_1, window_bounds = array<i64: 512, 128>}, {transform_indices = @transform_2, window_bounds = array<i64: 1, 128>}, {transform_indices = @transform_3, window_bounds = array<i64: 8, 128>}]} {
    %c0_i32 = arith.constant 0 : i32
    %0 = arith.cmpi eq, %arg2, %c0_i32 : i32
    %1 = arith.extui %0 : i1 to i32
    %c0_i32_0 = arith.constant 0 : i32
    %2 = arith.cmpi ne, %1, %c0_i32_0 : i32
    scf.if %2 {
      %cst_10 = arith.constant 0.000000e+00 : f32
      %12 = vector.broadcast %cst_10 : f32 to vector<8x128xf32>
      %c0_11 = arith.constant 0 : index
      %c0_12 = arith.constant 0 : index
      %13 = vector.load %arg7[%c0_11, %c0_12] : memref<8x128xf32, #tpu.memory_space<vmem>>, vector<8x128xf32>
      tpu.vector_store %arg7[%c0_11, %c0_12], %12 {strides = array<i32>} : memref<8x128xf32, #tpu.memory_space<vmem>>, vector<8x128xf32>,
    } else {
    }
    %c0 = arith.constant 0 : index
    %c0_1 = arith.constant 0 : index
    %3 = vector.load %arg7[%c0, %c0_1] : memref<8x128xf32, #tpu.memory_space<vmem>>, vector<8x128xf32>
    %c0_2 = arith.constant 0 : index
    %c0_3 = arith.constant 0 : index
    %4 = vector.load %arg3[%c0_2, %c0_3] : memref<8x512xbf16, #tpu.memory_space<vmem>>, vector<8x512xbf16>
    %c0_4 = arith.constant 0 : index
    %c0_5 = arith.constant 0 : index
    %5 = vector.load %arg4[%c0_4, %c0_5] : memref<512x128xbf16, #tpu.memory_space<vmem>>, vector<512x128xbf16>
    %cst = arith.constant dense<0.000000e+00> : vector<8x128xf32>
    %6 = tpu.matmul %4, %5, %cst {dimension_numbers = #tpu.dot_dimension_numbers<[1], [0], [0], [1], [0, 0, 1, 1], [], []>} : vector<8x512xbf16>, vector<512x128xbf16>, vector<8x128xf32> -> vector<8x128xf32>
    %7 = arith.addf %3, %6 : vector<8x128xf32>
    %c0_6 = arith.constant 0 : index
    %c0_7 = arith.constant 0 : index
    %8 = vector.load %arg7[%c0_6, %c0_7] : memref<8x128xf32, #tpu.memory_space<vmem>>, vector<8x128xf32>
    tpu.vector_store %arg7[%c0_6, %c0_7], %7 {strides = array<i32>} : memref<8x128xf32, #tpu.memory_space<vmem>>, vector<8x128xf32>,
    %c0_i32_8 = arith.constant 0 : i32
    %9 = arith.cmpi eq, %arg2, %c0_i32_8 : i32
    %10 = arith.extui %9 : i1 to i32
    %c0_i32_9 = arith.constant 0 : i32
    %11 = arith.cmpi ne, %10, %c0_i32_9 : i32
    scf.if %11 {
      %c0_10 = arith.constant 0 : index
      %c0_11 = arith.constant 0 : index
      %12 = vector.load %arg7[%c0_10, %c0_11] : memref<8x128xf32, #tpu.memory_space<vmem>>, vector<8x128xf32>
      %c0_12 = arith.constant 0 : index
      %c0_13 = arith.constant 0 : index
      %13 = vector.load %arg5[%c0_12, %c0_13] : memref<1x128xf32, #tpu.memory_space<vmem>>, vector<1x128xf32>
      %14 = vector.broadcast %13 : vector<1x128xf32> to vector<8x128xf32>
      %15 = arith.addf %12, %14 : vector<8x128xf32>
      %c0_14 = arith.constant 0 : index
      %c0_15 = arith.constant 0 : index
      %16 = vector.load %arg6[%c0_14, %c0_15] : memref<8x128xf32, #tpu.memory_space<vmem>>, vector<8x128xf32>
      tpu.vector_store %arg6[%c0_14, %c0_15], %15 {strides = array<i32>} : memref<8x128xf32, #tpu.memory_space<vmem>>, vector<8x128xf32>,
    } else {
    }
    return
  }
  func.func @transform_0(%arg0: i32, %arg1: i32, %arg2: i32) -> (i32, i32) {
    %c0_i32 = arith.constant 0 : i32
    return %arg0, %arg2 : i32, i32
  }
  func.func @transform_1(%arg0: i32, %arg1: i32, %arg2: i32) -> (i32, i32) {
    %c0_i32 = arith.constant 0 : i32
    return %arg2, %arg1 : i32, i32
  }
  func.func @transform_2(%arg0: i32, %arg1: i32, %arg2: i32) -> (i32, i32) {
    %c0_i32 = arith.constant 0 : i32
    %c0_i32_0 = arith.constant 0 : i32
    return %c0_i32, %arg1 : i32, i32
  }
  func.func @transform_3(%arg0: i32, %arg1: i32, %arg2: i32) -> (i32, i32) {
    %c0_i32 = arith.constant 0 : i32
    return %arg0, %arg1 : i32, i32
  }
}

</mosaic_0001>

<llo_original>
// kernel: _lambda_.4
$region0: #{_lambda_.4}
  #allocation0 [shape = 'u32[]', space=smem, size = 0x4, offset = 0x4, fixed_abs, tag = 'smem constant byte address 0x4 - core index']
  #allocation1 [shape = 'u32[144,128]{1,0:T(1,128)}', space=vmem, size = 0x12000, scoped, tag = 'internal scratch']
  #allocation2 [shape = 'f32[128,128]{1,0:T(8,128)}', space=vmem, size = 0x10000, scoped, tag = 'scratch operand']
  %s0 = inlined_call_operand.vmem [shape: bf16[128,128], index: 0, kind: input, shape index: {}]
  %s1 = inlined_call_operand.vmem [shape: bf16[128,128], index: 1, kind: input, shape index: {}]
  %s2 = inlined_call_operand.vmem [shape: f32[1,128], index: 2, kind: input, shape index: {}]
  %s3 = inlined_call_operand.vmem [shape: bf16[128,128], index: 3, kind: output, shape index: {}]
  %s4 = sld [smem:[#allocation0]]
  $region30: #{_lambda_.4} parent=0
    _
  %s6 = ssub.s32 1, %s4
  %s7 = scalar_select 0, %s6, %s4
  // Predicated region
  $region2: #{_lambda_.4} parent=0 // pred_check
    _
  $region3: #{_lambda_.4} parent=0 // pred_check_branch
    %9 = sbr.rel (0) target = $region5
  $region4: #{_lambda_.4} parent=0 // pred_region
    _
  $region5: #{_lambda_.4} parent=0 // pred_fallthru
    _
  // Predicated region
  $region6: #{_lambda_.4} parent=0 // pred_check
    _
  $region7: #{_lambda_.4} parent=0 // pred_check_branch
    %11 = sbr.rel (0) target = $region9
  $region8: #{_lambda_.4} parent=0 // pred_region
    _
  $region9: #{_lambda_.4} parent=0 // pred_fallthru
    _
  // Predicated region
  $region10: #{_lambda_.4} parent=0 // pred_check
    _
  $region11: #{_lambda_.4} parent=0 // pred_check_branch
    %13 = sbr.rel (0) target = $region13
  $region12: #{_lambda_.4} parent=0 // pred_region
    _
  $region13: #{_lambda_.4} parent=0 // pred_fallthru
    _
  %p15 = scmp.eq.s32.totalorder 0, 0
  // Predicated region
  $region14: #{_lambda_.4} parent=0 // pred_check
    %p16 = pneg %p15
  $region15: #{_lambda_.4} parent=0 // pred_check_branch
    %18 = sbr.rel (%p16) target = $region17
  $region16: #{_lambda_.4} parent=0 // pred_region
    %19 = vst [vmem:[#allocation2] sm:$0xff] 0.0
    %20 = vst [vmem:[#allocation2 + $0x8] sm:$0xff] 0.0
    %21 = vst [vmem:[#allocation2 + $0x10] sm:$0xff] 0.0
    %22 = vst [vmem:[#allocation2 + $0x18] sm:$0xff] 0.0
    %23 = vst [vmem:[#allocation2 + $0x20] sm:$0xff] 0.0
    %24 = vst [vmem:[#allocation2 + $0x28] sm:$0xff] 0.0
    %25 = vst [vmem:[#allocation2 + $0x30] sm:$0xff] 0.0
    %26 = vst [vmem:[#allocation2 + $0x38] sm:$0xff] 0.0
    %27 = vst [vmem:[#allocation2 + $0x40] sm:$0xff] 0.0
    %28 = vst [vmem:[#allocation2 + $0x48] sm:$0xff] 0.0
    %29 = vst [vmem:[#allocation2 + $0x50] sm:$0xff] 0.0
    %30 = vst [vmem:[#allocation2 + $0x58] sm:$0xff] 0.0
    %31 = vst [vmem:[#allocation2 + $0x60] sm:$0xff] 0.0
    %32 = vst [vmem:[#allocation2 + $0x68] sm:$0xff] 0.0
    %33 = vst [vmem:[#allocation2 + $0x70] sm:$0xff] 0.0
    %34 = vst [vmem:[#allocation2 + $0x78] sm:$0xff] 0.0
  $region17: #{_lambda_.4} parent=0 // pred_fallthru
    _
  %v35 = vld [vmem:[#allocation2] sm:$0xff]
  %v36 = vld [vmem:[#allocation2 + $0x8] sm:$0xff]
  %v37 = vld [vmem:[#allocation2 + $0x10] sm:$0xff]
  %v38 = vld [vmem:[#allocation2 + $0x18] sm:$0xff]
  %v39 = vld [vmem:[#allocation2 + $0x20] sm:$0xff]
  %v40 = vld [vmem:[#allocation2 + $0x28] sm:$0xff]
  %v41 = vld [vmem:[#allocation2 + $0x30] sm:$0xff]
  %v42 = vld [vmem:[#allocation2 + $0x38] sm:$0xff]
  %v43 = vld [vmem:[#allocation2 + $0x40] sm:$0xff]
  %v44 = vld [vmem:[#allocation2 + $0x48] sm:$0xff]
  %v45 = vld [vmem:[#allocation2 + $0x50] sm:$0xff]
  %v46 = vld [vmem:[#allocation2 + $0x58] sm:$0xff]
  %v47 = vld [vmem:[#allocation2 + $0x60] sm:$0xff]
  %v48 = vld [vmem:[#allocation2 + $0x68] sm:$0xff]
  %v49 = vld [vmem:[#allocation2 + $0x70] sm:$0xff]
  %v50 = vld [vmem:[#allocation2 + $0x78] sm:$0xff]
  %v51 = vld [vmem:[%s0] sm:$0xf]
  %v52 = vld [vmem:[%s0 + $0x4] sm:$0xf]
  %v53 = vld [vmem:[%s0 + $0x8] sm:$0xf]
  %v54 = vld [vmem:[%s0 + $0xc] sm:$0xf]
  %v55 = vld [vmem:[%s0 + $0x10] sm:$0xf]
  %v56 = vld [vmem:[%s0 + $0x14] sm:$0xf]
  %v57 = vld [vmem:[%s0 + $0x18] sm:$0xf]
  %v58 = vld [vmem:[%s0 + $0x1c] sm:$0xf]
  %v59 = vld [vmem:[%s0 + $0x20] sm:$0xf]
  %v60 = vld [vmem:[%s0 + $0x24] sm:$0xf]
  %v61 = vld [vmem:[%s0 + $0x28] sm:$0xf]
  %v62 = vld [vmem:[%s0 + $0x2c] sm:$0xf]
  %v63 = vld [vmem:[%s0 + $0x30] sm:$0xf]
  %v64 = vld [vmem:[%s0 + $0x34] sm:$0xf]
  %v65 = vld [vmem:[%s0 + $0x38] sm:$0xf]
  %v66 = vld [vmem:[%s0 + $0x3c] sm:$0xf]
  %v67 = vld [vmem:[%s1] sm:$0xf]
  %v68 = vld [vmem:[%s1 + $0x4] sm:$0xf]
  %v69 = vld [vmem:[%s1 + $0x8] sm:$0xf]
  %v70 = vld [vmem:[%s1 + $0xc] sm:$0xf]
  %v71 = vld [vmem:[%s1 + $0x10] sm:$0xf]
  %v72 = vld [vmem:[%s1 + $0x14] sm:$0xf]
  %v73 = vld [vmem:[%s1 + $0x18] sm:$0xf]
  %v74 = vld [vmem:[%s1 + $0x1c] sm:$0xf]
  %v75 = vld [vmem:[%s1 + $0x20] sm:$0xf]
  %v76 = vld [vmem:[%s1 + $0x24] sm:$0xf]
  %v77 = vld [vmem:[%s1 + $0x28] sm:$0xf]
  %v78 = vld [vmem:[%s1 + $0x2c] sm:$0xf]
  %v79 = vld [vmem:[%s1 + $0x30] sm:$0xf]
  %v80 = vld [vmem:[%s1 + $0x34] sm:$0xf]
  %v81 = vld [vmem:[%s1 + $0x38] sm:$0xf]
  %v82 = vld [vmem:[%s1 + $0x3c] sm:$0xf]
  %v99 = vunpack.c.l.b16 %v51
  %v100 = vunpack.c.l.b16 %v52
  %v101 = vunpack.c.l.b16 %v53
  %v102 = vunpack.c.l.b16 %v54
  %v103 = vunpack.c.l.b16 %v55
  %v104 = vunpack.c.l.b16 %v56
  %v105 = vunpack.c.l.b16 %v57
  %v106 = vunpack.c.l.b16 %v58
  %v107 = vunpack.c.l.b16 %v59
  %v108 = vunpack.c.l.b16 %v60
  %v109 = vunpack.c.l.b16 %v61
  %v110 = vunpack.c.l.b16 %v62
  %v111 = vunpack.c.l.b16 %v63
  %v112 = vunpack.c.l.b16 %v64
  %v113 = vunpack.c.l.b16 %v65
  %v114 = vunpack.c.l.b16 %v66
  %v115 = vpack.c.b16 %v100, %v99
  %v116 = vpack.c.b16 %v102, %v101
  %v117 = vpack.c.b16 %v104, %v103
  %v118 = vpack.c.b16 %v106, %v105
  %v119 = vpack.c.b16 %v108, %v107
  %v120 = vpack.c.b16 %v110, %v109
  %v121 = vpack.c.b16 %v112, %v111
  %v122 = vpack.c.b16 %v114, %v113
  %v147 = vunpack.c.l.b16 %v67
  %v148 = vunpack.c.l.b16 %v68
  %v149 = vunpack.c.l.b16 %v69
  %v150 = vunpack.c.l.b16 %v70
  %v151 = vunpack.c.l.b16 %v71
  %v152 = vunpack.c.l.b16 %v72
  %v153 = vunpack.c.l.b16 %v73
  %v154 = vunpack.c.l.b16 %v74
  %v155 = vunpack.c.l.b16 %v75
  %v156 = vunpack.c.l.b16 %v76
  %v157 = vunpack.c.l.b16 %v77
  %v158 = vunpack.c.l.b16 %v78
  %v159 = vunpack.c.l.b16 %v79
  %v160 = vunpack.c.l.b16 %v80
  %v161 = vunpack.c.l.b16 %v81
  %v162 = vunpack.c.l.b16 %v82
  %v163 = vpack.c.b16 %v148, %v147
  %v164 = vpack.c.b16 %v150, %v149
  %v165 = vpack.c.b16 %v152, %v151
  %v166 = vpack.c.b16 %v154, %v153
  %v167 = vpack.c.b16 %v156, %v155
  %v168 = vpack.c.b16 %v158, %v157
  %v169 = vpack.c.b16 %v160, %v159
  %v170 = vpack.c.b16 %v162, %v161
  %179 = vmatprep.subr.bf16.mxu0 0
  %180 = vmatpush1.bf16.msra.mxu0 %v163
  %181 = vmatprep.subr.bf16.mxu0 0
  %182 = vmatpush1.bf16.msra.mxu0 %v164
  %183 = vmatprep.subr.bf16.mxu0 0
  %184 = vmatpush1.bf16.msra.mxu0 %v165
  %185 = vmatprep.subr.bf16.mxu0 0
  %186 = vmatpush1.bf16.msra.mxu0 %v166
  %187 = vmatprep.subr.bf16.mxu0 0
  %188 = vmatpush1.bf16.msra.mxu0 %v167
  %189 = vmatprep.subr.bf16.mxu0 0
  %190 = vmatpush1.bf16.msra.mxu0 %v168
  %191 = vmatprep.subr.bf16.mxu0 0
  %192 = vmatpush1.bf16.msra.mxu0 %v169
  %193 = vmatprep.subr.bf16.mxu0 0
  %194 = vmatpush1.bf16.msra.mxu0 %v170
  %195 = vmatprep.subr.bf16.mxu0 0
  %196 = vmatpush1.bf16.msra.mxu0 0
  %197 = vmatprep.subr.bf16.mxu0 0
  %198 = vmatpush1.bf16.msra.mxu0 0
  %199 = vmatprep.subr.bf16.mxu0 0
  %200 = vmatpush1.bf16.msra.mxu0 0
  %201 = vmatprep.subr.bf16.mxu0 0
  %202 = vmatpush1.bf16.msra.mxu0 0
  %203 = vmatprep.subr.bf16.mxu0 0
  %204 = vmatpush1.bf16.msra.mxu0 0
  %205 = vmatprep.subr.bf16.mxu0 0
  %206 = vmatpush1.bf16.msra.mxu0 0
  %207 = vmatprep.subr.bf16.mxu0 0
  %208 = vmatpush1.bf16.msra.mxu0 0
  %209 = vmatprep.subr.bf16.mxu0 0
  %210 = vmatpush1.bf16.msra.mxu0 0
  %211 = vmatprep.mubr.bf16.mxu0 0
  %212 = vmatmul.mubr.bf16.gmra.mrb[0].mxu0 %v115
  %v213 = vpop.f32.mrb[0].mxu0
  %v214 = vadd.f32 0.0, %v213
  %v215 = vpop.f32.mrb[0].mxu0
  %v216 = vpop.f32.mrb[0].mxu0
  %v217 = vadd.f32 0.0, %v216
  %v218 = vpop.f32.mrb[0].mxu0
  %219 = vmatprep.mubr.bf16.mxu0 0
  %220 = vmatmul.mubr.bf16.gmra.mrb[0].mxu0 %v116
  %v221 = vpop.f32.mrb[0].mxu0
  %v222 = vadd.f32 0.0, %v221
  %v223 = vpop.f32.mrb[0].mxu0
  %v224 = vpop.f32.mrb[0].mxu0
  %v225 = vadd.f32 0.0, %v224
  %v226 = vpop.f32.mrb[0].mxu0
  %227 = vmatprep.mubr.bf16.mxu0 0
  %228 = vmatmul.mubr.bf16.gmra.mrb[0].mxu0 %v117
  %v229 = vpop.f32.mrb[0].mxu0
  %v230 = vadd.f32 0.0, %v229
  %v231 = vpop.f32.mrb[0].mxu0
  %v232 = vpop.f32.mrb[0].mxu0
  %v233 = vadd.f32 0.0, %v232
  %v234 = vpop.f32.mrb[0].mxu0
  %235 = vmatprep.mubr.bf16.mxu0 0
  %236 = vmatmul.mubr.bf16.gmra.mrb[0].mxu0 %v118
  %v237 = vpop.f32.mrb[0].mxu0
  %v238 = vadd.f32 0.0, %v237
  %v239 = vpop.f32.mrb[0].mxu0
  %v240 = vpop.f32.mrb[0].mxu0
  %v241 = vadd.f32 0.0, %v240
  %v242 = vpop.f32.mrb[0].mxu0
  %243 = vmatprep.mubr.bf16.mxu0 0
  %244 = vmatmul.mubr.bf16.gmra.mrb[0].mxu0 %v119
  %v245 = vpop.f32.mrb[0].mxu0
  %v246 = vadd.f32 0.0, %v245
  %v247 = vpop.f32.mrb[0].mxu0
  %v248 = vpop.f32.mrb[0].mxu0
  %v249 = vadd.f32 0.0, %v248
  %v250 = vpop.f32.mrb[0].mxu0
  %251 = vmatprep.mubr.bf16.mxu0 0
  %252 = vmatmul.mubr.bf16.gmra.mrb[0].mxu0 %v120
  %v253 = vpop.f32.mrb[0].mxu0
  %v254 = vadd.f32 0.0, %v253
  %v255 = vpop.f32.mrb[0].mxu0
  %v256 = vpop.f32.mrb[0].mxu0
  %v257 = vadd.f32 0.0, %v256
  %v258 = vpop.f32.mrb[0].mxu0
  %259 = vmatprep.mubr.bf16.mxu0 0
  %260 = vmatmul.mubr.bf16.gmra.mrb[0].mxu0 %v121
  %v261 = vpop.f32.mrb[0].mxu0
  %v262 = vadd.f32 0.0, %v261
  %v263 = vpop.f32.mrb[0].mxu0
  %v264 = vpop.f32.mrb[0].mxu0
  %v265 = vadd.f32 0.0, %v264
  %v266 = vpop.f32.mrb[0].mxu0
  %267 = vmatprep.mubr.bf16.mxu0 0
  %268 = vmatmul.mubr.bf16.gmra.mrb[0].mxu0 %v122
  %v269 = vpop.f32.mrb[0].mxu0
  %v270 = vadd.f32 0.0, %v269
  %v271 = vpop.f32.mrb[0].mxu0
  %v272 = vpop.f32.mrb[0].mxu0
  %v273 = vadd.f32 0.0, %v272
  %v274 = vpop.f32.mrb[0].mxu0
  %275 = vdwg.mxu0
  %v276 = vadd.f32 %v35, %v214
  %v277 = vadd.f32 %v36, %v217
  %v278 = vadd.f32 %v37, %v222
  %v279 = vadd.f32 %v38, %v225
  %v280 = vadd.f32 %v39, %v230
  %v281 = vadd.f32 %v40, %v233
  %v282 = vadd.f32 %v41, %v238
  %v283 = vadd.f32 %v42, %v241
  %v284 = vadd.f32 %v43, %v246
  %v285 = vadd.f32 %v44, %v249
  %v286 = vadd.f32 %v45, %v254
  %v287 = vadd.f32 %v46, %v257
  %v288 = vadd.f32 %v47, %v262
  %v289 = vadd.f32 %v48, %v265
  %v290 = vadd.f32 %v49, %v270
  %v291 = vadd.f32 %v50, %v273
  %292 = vst [vmem:[#allocation2] sm:$0xff] %v276
  %293 = vst [vmem:[#allocation2 + $0x8] sm:$0xff] %v277
  %294 = vst [vmem:[#allocation2 + $0x10] sm:$0xff] %v278
  %295 = vst [vmem:[#allocation2 + $0x18] sm:$0xff] %v279
  %296 = vst [vmem:[#allocation2 + $0x20] sm:$0xff] %v280
  %297 = vst [vmem:[#allocation2 + $0x28] sm:$0xff] %v281
  %298 = vst [vmem:[#allocation2 + $0x30] sm:$0xff] %v282
  %299 = vst [vmem:[#allocation2 + $0x38] sm:$0xff] %v283
  %300 = vst [vmem:[#allocation2 + $0x40] sm:$0xff] %v284
  %301 = vst [vmem:[#allocation2 + $0x48] sm:$0xff] %v285
  %302 = vst [vmem:[#allocation2 + $0x50] sm:$0xff] %v286
  %303 = vst [vmem:[#allocation2 + $0x58] sm:$0xff] %v287
  %304 = vst [vmem:[#allocation2 + $0x60] sm:$0xff] %v288
  %305 = vst [vmem:[#allocation2 + $0x68] sm:$0xff] %v289
  %306 = vst [vmem:[#allocation2 + $0x70] sm:$0xff] %v290
  %307 = vst [vmem:[#allocation2 + $0x78] sm:$0xff] %v291
  // Predicated region
  $region18: #{_lambda_.4} parent=0 // pred_check
    %p308 = pneg %p15
  $region19: #{_lambda_.4} parent=0 // pred_check_branch
    %310 = sbr.rel (%p308) target = $region21
  $region20: #{_lambda_.4} parent=0 // pred_region
    %v311 = vld [vmem:[#allocation2] sm:$0xff]
    %v312 = vld [vmem:[#allocation2 + $0x8] sm:$0xff]
    %v313 = vld [vmem:[#allocation2 + $0x10] sm:$0xff]
    %v314 = vld [vmem:[#allocation2 + $0x18] sm:$0xff]
    %v315 = vld [vmem:[#allocation2 + $0x20] sm:$0xff]
    %v316 = vld [vmem:[#allocation2 + $0x28] sm:$0xff]
    %v317 = vld [vmem:[#allocation2 + $0x30] sm:$0xff]
    %v318 = vld [vmem:[#allocation2 + $0x38] sm:$0xff]
    %v319 = vld [vmem:[#allocation2 + $0x40] sm:$0xff]
    %v320 = vld [vmem:[#allocation2 + $0x48] sm:$0xff]
    %v321 = vld [vmem:[#allocation2 + $0x50] sm:$0xff]
    %v322 = vld [vmem:[#allocation2 + $0x58] sm:$0xff]
    %v323 = vld [vmem:[#allocation2 + $0x60] sm:$0xff]
    %v324 = vld [vmem:[#allocation2 + $0x68] sm:$0xff]
    %v325 = vld [vmem:[#allocation2 + $0x70] sm:$0xff]
    %v326 = vld [vmem:[#allocation2 + $0x78] sm:$0xff]
    %v327 = vld [vmem:[%s2] sm:$0x1]
    %v329 = vlaneseq
    %v330 = vshrl.u32 %v329, 7
    %v331 = vsub.s32 0, %v330
    %v332 = vrot.slane %v327, %v331
    %v334 = vadd.f32 %v311, %v332
    %v335 = vadd.f32 %v312, %v332
    %v336 = vadd.f32 %v313, %v332
    %v337 = vadd.f32 %v314, %v332
    %v338 = vadd.f32 %v315, %v332
    %v339 = vadd.f32 %v316, %v332
    %v340 = vadd.f32 %v317, %v332
    %v341 = vadd.f32 %v318, %v332
    %v342 = vadd.f32 %v319, %v332
    %v343 = vadd.f32 %v320, %v332
    %v344 = vadd.f32 %v321, %v332
    %v345 = vadd.f32 %v322, %v332
    %v346 = vadd.f32 %v323, %v332
    %v347 = vadd.f32 %v324, %v332
    %v348 = vadd.f32 %v325, %v332
    %v349 = vadd.f32 %v326, %v332
    %vm350 = vcmp.ge.f32.partialorder %v334, 0.0
    %vm351 = vcmp.ge.f32.partialorder %v335, 0.0
    %vm352 = vcmp.ge.f32.partialorder %v336, 0.0
    %vm353 = vcmp.ge.f32.partialorder %v337, 0.0
    %vm354 = vcmp.ge.f32.partialorder %v338, 0.0
    %vm355 = vcmp.ge.f32.partialorder %v339, 0.0
    %vm356 = vcmp.ge.f32.partialorder %v340, 0.0
    %vm357 = vcmp.ge.f32.partialorder %v341, 0.0
    %vm358 = vcmp.ge.f32.partialorder %v342, 0.0
    %vm359 = vcmp.ge.f32.partialorder %v343, 0.0
    %vm360 = vcmp.ge.f32.partialorder %v344, 0.0
    %vm361 = vcmp.ge.f32.partialorder %v345, 0.0
    %vm362 = vcmp.ge.f32.partialorder %v346, 0.0
    %vm363 = vcmp.ge.f32.partialorder %v347, 0.0
    %vm364 = vcmp.ge.f32.partialorder %v348, 0.0
    %vm365 = vcmp.ge.f32.partialorder %v349, 0.0
    %v366 = vmul.f32 %v334, 0.2
    %v367 = vmul.f32 %v335, 0.2
    %v368 = vmul.f32 %v336, 0.2
    %v369 = vmul.f32 %v337, 0.2
    %v370 = vmul.f32 %v338, 0.2
    %v371 = vmul.f32 %v339, 0.2
    %v372 = vmul.f32 %v340, 0.2
    %v373 = vmul.f32 %v341, 0.2
    %v374 = vmul.f32 %v342, 0.2
    %v375 = vmul.f32 %v343, 0.2
    %v376 = vmul.f32 %v344, 0.2
    %v377 = vmul.f32 %v345, 0.2
    %v378 = vmul.f32 %v346, 0.2
    %v379 = vmul.f32 %v347, 0.2
    %v380 = vmul.f32 %v348, 0.2
    %v381 = vmul.f32 %v349, 0.2
    %v382 = vsel %vm350, %v334, %v366
    %v383 = vsel %vm351, %v335, %v367
    %v384 = vsel %vm352, %v336, %v368
    %v385 = vsel %vm353, %v337, %v369
    %v386 = vsel %vm354, %v338, %v370
    %v387 = vsel %vm355, %v339, %v371
    %v388 = vsel %vm356, %v340, %v372
    %v389 = vsel %vm357, %v341, %v373
    %v390 = vsel %vm358, %v342, %v374
    %v391 = vsel %vm359, %v343, %v375
    %v392 = vsel %vm360, %v344, %v376
    %v393 = vsel %vm361, %v345, %v377
    %v394 = vsel %vm362, %v346, %v378
    %v395 = vsel %vm363, %v347, %v379
    %v396 = vsel %vm364, %v348, %v380
    %v397 = vsel %vm365, %v349, %v381
    %v398 = vpack.c.bf16 %v383, %v382
    %v399 = vpack.c.bf16 %v385, %v384
    %v400 = vpack.c.bf16 %v387, %v386
    %v401 = vpack.c.bf16 %v389, %v388
    %v402 = vpack.c.bf16 %v391, %v390
    %v403 = vpack.c.bf16 %v393, %v392
    %v404 = vpack.c.bf16 %v395, %v394
    %v405 = vpack.c.bf16 %v397, %v396
    %v414 = vunpack.c.l.b16 %v398
    %v415 = vunpack.c.h.b16 %v398
    %v416 = vunpack.c.l.b16 %v399
    %v417 = vunpack.c.h.b16 %v399
    %v418 = vunpack.c.l.b16 %v400
    %v419 = vunpack.c.h.b16 %v400
    %v420 = vunpack.c.l.b16 %v401
    %v421 = vunpack.c.h.b16 %v401
    %v422 = vunpack.c.l.b16 %v402
    %v423 = vunpack.c.h.b16 %v402
    %v424 = vunpack.c.l.b16 %v403
    %v425 = vunpack.c.h.b16 %v403
    %v426 = vunpack.c.l.b16 %v404
    %v427 = vunpack.c.h.b16 %v404
    %v428 = vunpack.c.l.b16 %v405
    %v429 = vunpack.c.h.b16 %v405
    %v430 = vpack.c.b16 %v414, %v414
    %v431 = vpack.c.b16 %v415, %v415
    %v432 = vpack.c.b16 %v416, %v416
    %v433 = vpack.c.b16 %v417, %v417
    %v434 = vpack.c.b16 %v418, %v418
    %v435 = vpack.c.b16 %v419, %v419
    %v436 = vpack.c.b16 %v420, %v420
    %v437 = vpack.c.b16 %v421, %v421
    %v438 = vpack.c.b16 %v422, %v422
    %v439 = vpack.c.b16 %v423, %v423
    %v440 = vpack.c.b16 %v424, %v424
    %v441 = vpack.c.b16 %v425, %v425
    %v442 = vpack.c.b16 %v426, %v426
    %v443 = vpack.c.b16 %v427, %v427
    %v444 = vpack.c.b16 %v428, %v428
    %v445 = vpack.c.b16 %v429, %v429
    %462 = vst [vmem:[%s3] sm:$0xf] %v430
    %463 = vst [vmem:[%s3 + $0x4] sm:$0xf] %v431
    %464 = vst [vmem:[%s3 + $0x8] sm:$0xf] %v432
    %465 = vst [vmem:[%s3 + $0xc] sm:$0xf] %v433
    %466 = vst [vmem:[%s3 + $0x10] sm:$0xf] %v434
    %467 = vst [vmem:[%s3 + $0x14] sm:$0xf] %v435
    %468 = vst [vmem:[%s3 + $0x18] sm:$0xf] %v436
    %469 = vst [vmem:[%s3 + $0x1c] sm:$0xf] %v437
    %470 = vst [vmem:[%s3 + $0x20] sm:$0xf] %v438
    %471 = vst [vmem:[%s3 + $0x24] sm:$0xf] %v439
    %472 = vst [vmem:[%s3 + $0x28] sm:$0xf] %v440
    %473 = vst [vmem:[%s3 + $0x2c] sm:$0xf] %v441
    %474 = vst [vmem:[%s3 + $0x30] sm:$0xf] %v442
    %475 = vst [vmem:[%s3 + $0x34] sm:$0xf] %v443
    %476 = vst [vmem:[%s3 + $0x38] sm:$0xf] %v444
    %477 = vst [vmem:[%s3 + $0x3c] sm:$0xf] %v445
  $region21: #{_lambda_.4} parent=0 // pred_fallthru
    _
  // Predicated region
  $region22: #{_lambda_.4} parent=0 // pred_check
    _
  $region23: #{_lambda_.4} parent=0 // pred_check_branch
    %479 = sbr.rel (0) target = $region25
  $region24: #{_lambda_.4} parent=0 // pred_region
    _
  $region25: #{_lambda_.4} parent=0 // pred_fallthru
    _
  // Predicated region
  $region26: #{_lambda_.4} parent=0 // pred_check
    _
  $region27: #{_lambda_.4} parent=0 // pred_check_branch
    %481 = sbr.rel (0) target = $region29
  $region28: #{_lambda_.4} parent=0 // pred_region
    _
  $region29: #{_lambda_.4} parent=0 // pred_fallthru
    _

// kernel: _lambda_.5
$region0: #{_lambda_.5}
  #allocation0 [shape = 'u32[]', space=smem, size = 0x4, offset = 0x4, fixed_abs, tag = 'smem constant byte address 0x4 - core index']
  #allocation1 [shape = 'u32[144,128]{1,0:T(1,128)}', space=vmem, size = 0x12000, scoped, tag = 'internal scratch']
  #allocation2 [shape = 'f32[32,128]{1,0:T(8,128)}', space=vmem, size = 0x4000, scoped, tag = 'scratch operand']
  %s0 = inlined_call_operand.vmem [shape: bf16[32,128], index: 0, kind: input, shape index: {}]
  %s1 = inlined_call_operand.vmem [shape: bf16[128,128], index: 1, kind: input, shape index: {}]
  %s2 = inlined_call_operand.vmem [shape: f32[1,128], index: 2, kind: input, shape index: {}]
  %s3 = inlined_call_operand.vmem [shape: f32[1,128], index: 3, kind: input, shape index: {}]
  %s4 = inlined_call_operand.vmem [shape: bf16[32,128], index: 4, kind: output, shape index: {}]
  %s5 = sld [smem:[#allocation0]]
  $region34: #{_lambda_.5} parent=0
    _
  %s7 = ssub.s32 1, %s5
  %s8 = scalar_select 0, %s7, %s5
  // Predicated region
  $region2: #{_lambda_.5} parent=0 // pred_check
    _
  $region3: #{_lambda_.5} parent=0 // pred_check_branch
    %10 = sbr.rel (0) target = $region5
  $region4: #{_lambda_.5} parent=0 // pred_region
    _
  $region5: #{_lambda_.5} parent=0 // pred_fallthru
    _
  // Predicated region
  $region6: #{_lambda_.5} parent=0 // pred_check
    _
  $region7: #{_lambda_.5} parent=0 // pred_check_branch
    %12 = sbr.rel (0) target = $region9
  $region8: #{_lambda_.5} parent=0 // pred_region
    _
  $region9: #{_lambda_.5} parent=0 // pred_fallthru
    _
  // Predicated region
  $region10: #{_lambda_.5} parent=0 // pred_check
    _
  $region11: #{_lambda_.5} parent=0 // pred_check_branch
    %14 = sbr.rel (0) target = $region13
  $region12: #{_lambda_.5} parent=0 // pred_region
    _
  $region13: #{_lambda_.5} parent=0 // pred_fallthru
    _
  // Predicated region
  $region14: #{_lambda_.5} parent=0 // pred_check
    _
  $region15: #{_lambda_.5} parent=0 // pred_check_branch
    %16 = sbr.rel (0) target = $region17
  $region16: #{_lambda_.5} parent=0 // pred_region
    _
  $region17: #{_lambda_.5} parent=0 // pred_fallthru
    _
  %p18 = scmp.eq.s32.totalorder 0, 0
  // Predicated region
  $region18: #{_lambda_.5} parent=0 // pred_check
    %p19 = pneg %p18
  $region19: #{_lambda_.5} parent=0 // pred_check_branch
    %21 = sbr.rel (%p19) target = $region21
  $region20: #{_lambda_.5} parent=0 // pred_region
    %22 = vst [vmem:[#allocation2] sm:$0xff] 0.0
    %23 = vst [vmem:[#allocation2 + $0x8] sm:$0xff] 0.0
    %24 = vst [vmem:[#allocation2 + $0x10] sm:$0xff] 0.0
    %25 = vst [vmem:[#allocation2 + $0x18] sm:$0xff] 0.0
  $region21: #{_lambda_.5} parent=0 // pred_fallthru
    _
  %v26 = vld [vmem:[#allocation2] sm:$0xff]
  %v27 = vld [vmem:[#allocation2 + $0x8] sm:$0xff]
  %v28 = vld [vmem:[#allocation2 + $0x10] sm:$0xff]
  %v29 = vld [vmem:[#allocation2 + $0x18] sm:$0xff]
  %v30 = vld [vmem:[%s0] sm:$0xf]
  %v31 = vld [vmem:[%s0 + $0x4] sm:$0xf]
  %v32 = vld [vmem:[%s0 + $0x8] sm:$0xf]
  %v33 = vld [vmem:[%s0 + $0xc] sm:$0xf]
  %v34 = vld [vmem:[%s1] sm:$0xf]
  %v35 = vld [vmem:[%s1 + $0x4] sm:$0xf]
  %v36 = vld [vmem:[%s1 + $0x8] sm:$0xf]
  %v37 = vld [vmem:[%s1 + $0xc] sm:$0xf]
  %v38 = vld [vmem:[%s1 + $0x10] sm:$0xf]
  %v39 = vld [vmem:[%s1 + $0x14] sm:$0xf]
  %v40 = vld [vmem:[%s1 + $0x18] sm:$0xf]
  %v41 = vld [vmem:[%s1 + $0x1c] sm:$0xf]
  %v42 = vld [vmem:[%s1 + $0x20] sm:$0xf]
  %v43 = vld [vmem:[%s1 + $0x24] sm:$0xf]
  %v44 = vld [vmem:[%s1 + $0x28] sm:$0xf]
  %v45 = vld [vmem:[%s1 + $0x2c] sm:$0xf]
  %v46 = vld [vmem:[%s1 + $0x30] sm:$0xf]
  %v47 = vld [vmem:[%s1 + $0x34] sm:$0xf]
  %v48 = vld [vmem:[%s1 + $0x38] sm:$0xf]
  %v49 = vld [vmem:[%s1 + $0x3c] sm:$0xf]
  %v54 = vunpack.c.l.b16 %v30
  %v55 = vunpack.c.l.b16 %v31
  %v56 = vunpack.c.l.b16 %v32
  %v57 = vunpack.c.l.b16 %v33
  %v58 = vpack.c.b16 %v55, %v54
  %v59 = vpack.c.b16 %v57, %v56
  %v78 = vunpack.c.l.b16 %v34
  %v79 = vunpack.c.l.b16 %v35
  %v80 = vunpack.c.l.b16 %v36
  %v81 = vunpack.c.l.b16 %v37
  %v82 = vunpack.c.l.b16 %v38
  %v83 = vunpack.c.l.b16 %v39
  %v84 = vunpack.c.l.b16 %v40
  %v85 = vunpack.c.l.b16 %v41
  %v86 = vunpack.c.l.b16 %v42
  %v87 = vunpack.c.l.b16 %v43
  %v88 = vunpack.c.l.b16 %v44
  %v89 = vunpack.c.l.b16 %v45
  %v90 = vunpack.c.l.b16 %v46
  %v91 = vunpack.c.l.b16 %v47
  %v92 = vunpack.c.l.b16 %v48
  %v93 = vunpack.c.l.b16 %v49
  %v94 = vpack.c.b16 %v79, %v78
  %v95 = vpack.c.b16 %v81, %v80
  %v96 = vpack.c.b16 %v83, %v82
  %v97 = vpack.c.b16 %v85, %v84
  %v98 = vpack.c.b16 %v87, %v86
  %v99 = vpack.c.b16 %v89, %v88
  %v100 = vpack.c.b16 %v91, %v90
  %v101 = vpack.c.b16 %v93, %v92
  %110 = vmatprep.subr.bf16.mxu0 0
  %111 = vmatpush1.bf16.msra.mxu0 %v94
  %112 = vmatprep.subr.bf16.mxu0 0
  %113 = vmatpush1.bf16.msra.mxu0 %v95
  %114 = vmatprep.subr.bf16.mxu0 0
  %115 = vmatpush1.bf16.msra.mxu0 %v96
  %116 = vmatprep.subr.bf16.mxu0 0
  %117 = vmatpush1.bf16.msra.mxu0 %v97
  %118 = vmatprep.subr.bf16.mxu0 0
  %119 = vmatpush1.bf16.msra.mxu0 %v98
  %120 = vmatprep.subr.bf16.mxu0 0
  %121 = vmatpush1.bf16.msra.mxu0 %v99
  %122 = vmatprep.subr.bf16.mxu0 0
  %123 = vmatpush1.bf16.msra.mxu0 %v100
  %124 = vmatprep.subr.bf16.mxu0 0
  %125 = vmatpush1.bf16.msra.mxu0 %v101
  %126 = vmatprep.subr.bf16.mxu0 0
  %127 = vmatpush1.bf16.msra.mxu0 0
  %128 = vmatprep.subr.bf16.mxu0 0
  %129 = vmatpush1.bf16.msra.mxu0 0
  %130 = vmatprep.subr.bf16.mxu0 0
  %131 = vmatpush1.bf16.msra.mxu0 0
  %132 = vmatprep.subr.bf16.mxu0 0
  %133 = vmatpush1.bf16.msra.mxu0 0
  %134 = vmatprep.subr.bf16.mxu0 0
  %135 = vmatpush1.bf16.msra.mxu0 0
  %136 = vmatprep.subr.bf16.mxu0 0
  %137 = vmatpush1.bf16.msra.mxu0 0
  %138 = vmatprep.subr.bf16.mxu0 0
  %139 = vmatpush1.bf16.msra.mxu0 0
  %140 = vmatprep.subr.bf16.mxu0 0
  %141 = vmatpush1.bf16.msra.mxu0 0
  %142 = vmatprep.mubr.bf16.mxu0 0
  %143 = vmatmul.mubr.bf16.gmra.mrb[0].mxu0 %v58
  %v144 = vpop.f32.mrb[0].mxu0
  %v145 = vadd.f32 0.0, %v144
  %v146 = vpop.f32.mrb[0].mxu0
  %v147 = vpop.f32.mrb[0].mxu0
  %v148 = vadd.f32 0.0, %v147
  %v149 = vpop.f32.mrb[0].mxu0
  %150 = vmatprep.mubr.bf16.mxu0 0
  %151 = vmatmul.mubr.bf16.gmra.mrb[0].mxu0 %v59
  %v152 = vpop.f32.mrb[0].mxu0
  %v153 = vadd.f32 0.0, %v152
  %v154 = vpop.f32.mrb[0].mxu0
  %v155 = vpop.f32.mrb[0].mxu0
  %v156 = vadd.f32 0.0, %v155
  %v157 = vpop.f32.mrb[0].mxu0
  %158 = vdwg.mxu0
  %v159 = vadd.f32 %v26, %v145
  %v160 = vadd.f32 %v27, %v148
  %v161 = vadd.f32 %v28, %v153
  %v162 = vadd.f32 %v29, %v156
  %163 = vst [vmem:[#allocation2] sm:$0xff] %v159
  %164 = vst [vmem:[#allocation2 + $0x8] sm:$0xff] %v160
  %165 = vst [vmem:[#allocation2 + $0x10] sm:$0xff] %v161
  %166 = vst [vmem:[#allocation2 + $0x18] sm:$0xff] %v162
  // Predicated region
  $region22: #{_lambda_.5} parent=0 // pred_check
    %p167 = pneg %p18
  $region23: #{_lambda_.5} parent=0 // pred_check_branch
    %169 = sbr.rel (%p167) target = $region25
  $region24: #{_lambda_.5} parent=0 // pred_region
    %v170 = vld [vmem:[#allocation2] sm:$0xff]
    %v171 = vld [vmem:[#allocation2 + $0x8] sm:$0xff]
    %v172 = vld [vmem:[#allocation2 + $0x10] sm:$0xff]
    %v173 = vld [vmem:[#allocation2 + $0x18] sm:$0xff]
    %v174 = vadd.f32 %v170, %v171
    %v175 = vadd.f32 %v174, %v172
    %v176 = vadd.f32 %v175, %v173
    %v177 = vrot.slane %v176, 4
    %v178 = vadd.f32 %v176, %v177
    %v179 = vrot.slane %v178, 2
    %v180 = vadd.f32 %v178, %v179
    %v181 = vrot.slane %v180, 1
    %v182 = vadd.f32 %v180, %v181
    %v183 = vmul.f32 %v182, 0.03125
    %v184 = vmul.f32 %v170, %v170
    %v185 = vmul.f32 %v171, %v171
    %v186 = vmul.f32 %v172, %v172
    %v187 = vmul.f32 %v173, %v173
    %v188 = vadd.f32 %v184, %v185
    %v189 = vadd.f32 %v188, %v186
    %v190 = vadd.f32 %v189, %v187
    %v191 = vrot.slane %v190, 4
    %v192 = vadd.f32 %v190, %v191
    %v193 = vrot.slane %v192, 2
    %v194 = vadd.f32 %v192, %v193
    %v195 = vrot.slane %v194, 1
    %v196 = vadd.f32 %v194, %v195
    %v197 = vmul.f32 %v196, 0.03125
    %v198 = vmul.f32 %v183, %v183
    %v199 = vsub.f32 %v197, %v198
    %v200 = vld [vmem:[%s2] sm:$0x1]
    %v201 = vadd.f32 %v199, 1e-05
    %v202 = vrsqrt.pop %v201
    %v203 = vmul.f32 %v200, %v202
    %v204 = vld [vmem:[%s3] sm:$0x1]
    %v205 = vmul.f32 %v183, %v203
    %v206 = vsub.f32 %v204, %v205
    %v208 = vlaneseq
    %v209 = vshrl.u32 %v208, 7
    %v210 = vsub.s32 0, %v209
    %v211 = vrot.slane %v203, %v210
    %v213 = vmul.f32 %v170, %v211
    %v214 = vmul.f32 %v171, %v211
    %v215 = vmul.f32 %v172, %v211
    %v216 = vmul.f32 %v173, %v211
    %v218 = vlaneseq
    %v219 = vshrl.u32 %v218, 7
    %v220 = vsub.s32 0, %v219
    %v221 = vrot.slane %v206, %v220
    %v223 = vadd.f32 %v213, %v221
    %v224 = vadd.f32 %v214, %v221
    %v225 = vadd.f32 %v215, %v221
    %v226 = vadd.f32 %v216, %v221
    %vm227 = vcmp.ge.f32.partialorder %v223, 0.0
    %vm228 = vcmp.ge.f32.partialorder %v224, 0.0
    %vm229 = vcmp.ge.f32.partialorder %v225, 0.0
    %vm230 = vcmp.ge.f32.partialorder %v226, 0.0
    %v231 = vmul.f32 %v223, 0.2
    %v232 = vmul.f32 %v224, 0.2
    %v233 = vmul.f32 %v225, 0.2
    %v234 = vmul.f32 %v226, 0.2
    %v235 = vsel %vm227, %v223, %v231
    %v236 = vsel %vm228, %v224, %v232
    %v237 = vsel %vm229, %v225, %v233
    %v238 = vsel %vm230, %v226, %v234
    %v239 = vpack.c.bf16 %v236, %v235
    %v240 = vpack.c.bf16 %v238, %v237
    %v243 = vunpack.c.l.b16 %v239
    %v244 = vunpack.c.h.b16 %v239
    %v245 = vunpack.c.l.b16 %v240
    %v246 = vunpack.c.h.b16 %v240
    %v247 = vpack.c.b16 %v243, %v243
    %v248 = vpack.c.b16 %v244, %v244
    %v249 = vpack.c.b16 %v245, %v245
    %v250 = vpack.c.b16 %v246, %v246
    %255 = vst [vmem:[%s4] sm:$0xf] %v247
    %256 = vst [vmem:[%s4 + $0x4] sm:$0xf] %v248
    %257 = vst [vmem:[%s4 + $0x8] sm:$0xf] %v249
    %258 = vst [vmem:[%s4 + $0xc] sm:$0xf] %v250
  $region25: #{_lambda_.5} parent=0 // pred_fallthru
    _
  // Predicated region
  $region26: #{_lambda_.5} parent=0 // pred_check
    _
  $region27: #{_lambda_.5} parent=0 // pred_check_branch
    %260 = sbr.rel (0) target = $region29
  $region28: #{_lambda_.5} parent=0 // pred_region
    _
  $region29: #{_lambda_.5} parent=0 // pred_fallthru
    _
  // Predicated region
  $region30: #{_lambda_.5} parent=0 // pred_check
    _
  $region31: #{_lambda_.5} parent=0 // pred_check_branch
    %262 = sbr.rel (0) target = $region33
  $region32: #{_lambda_.5} parent=0 // pred_region
    _
  $region33: #{_lambda_.5} parent=0 // pred_fallthru
    _

// kernel: _lambda_.6
$region0: #{_lambda_.6}
  #allocation0 [shape = 'u32[]', space=smem, size = 0x4, offset = 0x4, fixed_abs, tag = 'smem constant byte address 0x4 - core index']
  #allocation1 [shape = 'u32[144,128]{1,0:T(1,128)}', space=vmem, size = 0x12000, scoped, tag = 'internal scratch']
  #allocation2 [shape = 'f32[24,128]{1,0:T(8,128)}', space=vmem, size = 0x3000, scoped, tag = 'scratch operand']
  %s0 = inlined_call_operand.vmem [shape: bf16[24,256], index: 0, kind: input, shape index: {}]
  %s1 = inlined_call_operand.vmem [shape: bf16[256,128], index: 1, kind: input, shape index: {}]
  %s2 = inlined_call_operand.vmem [shape: f32[1,128], index: 2, kind: input, shape index: {}]
  %s3 = inlined_call_operand.vmem [shape: f32[1,128], index: 3, kind: input, shape index: {}]
  %s4 = inlined_call_operand.vmem [shape: bf16[24,128], index: 4, kind: output, shape index: {}]
  %s5 = sld [smem:[#allocation0]]
  $region34: #{_lambda_.6} parent=0
    _
  %s7 = ssub.s32 1, %s5
  %s8 = scalar_select 0, %s7, %s5
  // Predicated region
  $region2: #{_lambda_.6} parent=0 // pred_check
    _
  $region3: #{_lambda_.6} parent=0 // pred_check_branch
    %10 = sbr.rel (0) target = $region5
  $region4: #{_lambda_.6} parent=0 // pred_region
    _
  $region5: #{_lambda_.6} parent=0 // pred_fallthru
    _
  // Predicated region
  $region6: #{_lambda_.6} parent=0 // pred_check
    _
  $region7: #{_lambda_.6} parent=0 // pred_check_branch
    %12 = sbr.rel (0) target = $region9
  $region8: #{_lambda_.6} parent=0 // pred_region
    _
  $region9: #{_lambda_.6} parent=0 // pred_fallthru
    _
  // Predicated region
  $region10: #{_lambda_.6} parent=0 // pred_check
    _
  $region11: #{_lambda_.6} parent=0 // pred_check_branch
    %14 = sbr.rel (0) target = $region13
  $region12: #{_lambda_.6} parent=0 // pred_region
    _
  $region13: #{_lambda_.6} parent=0 // pred_fallthru
    _
  // Predicated region
  $region14: #{_lambda_.6} parent=0 // pred_check
    _
  $region15: #{_lambda_.6} parent=0 // pred_check_branch
    %16 = sbr.rel (0) target = $region17
  $region16: #{_lambda_.6} parent=0 // pred_region
    _
  $region17: #{_lambda_.6} parent=0 // pred_fallthru
    _
  %p18 = scmp.eq.s32.totalorder 0, 0
  // Predicated region
  $region18: #{_lambda_.6} parent=0 // pred_check
    %p19 = pneg %p18
  $region19: #{_lambda_.6} parent=0 // pred_check_branch
    %21 = sbr.rel (%p19) target = $region21
  $region20: #{_lambda_.6} parent=0 // pred_region
    %22 = vst [vmem:[#allocation2] sm:$0xff] 0.0
    %23 = vst [vmem:[#allocation2 + $0x8] sm:$0xff] 0.0
    %24 = vst [vmem:[#allocation2 + $0x10] sm:$0xff] 0.0
  $region21: #{_lambda_.6} parent=0 // pred_fallthru
    _
  %v25 = vld [vmem:[#allocation2] sm:$0xff]
  %v26 = vld [vmem:[#allocation2 + $0x8] sm:$0xff]
  %v27 = vld [vmem:[#allocation2 + $0x10] sm:$0xff]
  %v28 = vld [vmem:[%s0] sm:$0xff]
  %v29 = vld [vmem:[%s0 + $0x8] sm:$0xff]
  %v30 = vld [vmem:[%s0 + $0x10] sm:$0xff]
  %v31 = vld [vmem:[%s1] sm:$0xf]
  %v32 = vld [vmem:[%s1 + $0x4] sm:$0xf]
  %v33 = vld [vmem:[%s1 + $0x8] sm:$0xf]
  %v34 = vld [vmem:[%s1 + $0xc] sm:$0xf]
  %v35 = vld [vmem:[%s1 + $0x10] sm:$0xf]
  %v36 = vld [vmem:[%s1 + $0x14] sm:$0xf]
  %v37 = vld [vmem:[%s1 + $0x18] sm:$0xf]
  %v38 = vld [vmem:[%s1 + $0x1c] sm:$0xf]
  %v39 = vld [vmem:[%s1 + $0x20] sm:$0xf]
  %v40 = vld [vmem:[%s1 + $0x24] sm:$0xf]
  %v41 = vld [vmem:[%s1 + $0x28] sm:$0xf]
  %v42 = vld [vmem:[%s1 + $0x2c] sm:$0xf]
  %v43 = vld [vmem:[%s1 + $0x30] sm:$0xf]
  %v44 = vld [vmem:[%s1 + $0x34] sm:$0xf]
  %v45 = vld [vmem:[%s1 + $0x38] sm:$0xf]
  %v46 = vld [vmem:[%s1 + $0x3c] sm:$0xf]
  %v47 = vld [vmem:[%s1 + $0x40] sm:$0xf]
  %v48 = vld [vmem:[%s1 + $0x44] sm:$0xf]
  %v49 = vld [vmem:[%s1 + $0x48] sm:$0xf]
  %v50 = vld [vmem:[%s1 + $0x4c] sm:$0xf]
  %v51 = vld [vmem:[%s1 + $0x50] sm:$0xf]
  %v52 = vld [vmem:[%s1 + $0x54] sm:$0xf]
  %v53 = vld [vmem:[%s1 + $0x58] sm:$0xf]
  %v54 = vld [vmem:[%s1 + $0x5c] sm:$0xf]
  %v55 = vld [vmem:[%s1 + $0x60] sm:$0xf]
  %v56 = vld [vmem:[%s1 + $0x64] sm:$0xf]
  %v57 = vld [vmem:[%s1 + $0x68] sm:$0xf]
  %v58 = vld [vmem:[%s1 + $0x6c] sm:$0xf]
  %v59 = vld [vmem:[%s1 + $0x70] sm:$0xf]
  %v60 = vld [vmem:[%s1 + $0x74] sm:$0xf]
  %v61 = vld [vmem:[%s1 + $0x78] sm:$0xf]
  %v62 = vld [vmem:[%s1 + $0x7c] sm:$0xf]
  %v66 = vunpack.c.l.b16 %v28
  %v67 = vunpack.c.h.b16 %v28
  %v68 = vunpack.c.l.b16 %v29
  %v69 = vunpack.c.h.b16 %v29
  %v70 = vunpack.c.l.b16 %v30
  %v71 = vunpack.c.h.b16 %v30
  %v72 = vpack.c.b16 %v68, %v66
  %v73 = vpack.c.b16 %v69, %v67
  %v74 = vpack.c.b16 %v70, %v70
  %v75 = vpack.c.b16 %v71, %v71
  %v112 = vunpack.c.l.b16 %v31
  %v113 = vunpack.c.l.b16 %v32
  %v114 = vunpack.c.l.b16 %v33
  %v115 = vunpack.c.l.b16 %v34
  %v116 = vunpack.c.l.b16 %v35
  %v117 = vunpack.c.l.b16 %v36
  %v118 = vunpack.c.l.b16 %v37
  %v119 = vunpack.c.l.b16 %v38
  %v120 = vunpack.c.l.b16 %v39
  %v121 = vunpack.c.l.b16 %v40
  %v122 = vunpack.c.l.b16 %v41
  %v123 = vunpack.c.l.b16 %v42
  %v124 = vunpack.c.l.b16 %v43
  %v125 = vunpack.c.l.b16 %v44
  %v126 = vunpack.c.l.b16 %v45
  %v127 = vunpack.c.l.b16 %v46
  %v128 = vunpack.c.l.b16 %v47
  %v129 = vunpack.c.l.b16 %v48
  %v130 = vunpack.c.l.b16 %v49
  %v131 = vunpack.c.l.b16 %v50
  %v132 = vunpack.c.l.b16 %v51
  %v133 = vunpack.c.l.b16 %v52
  %v134 = vunpack.c.l.b16 %v53
  %v135 = vunpack.c.l.b16 %v54
  %v136 = vunpack.c.l.b16 %v55
  %v137 = vunpack.c.l.b16 %v56
  %v138 = vunpack.c.l.b16 %v57
  %v139 = vunpack.c.l.b16 %v58
  %v140 = vunpack.c.l.b16 %v59
  %v141 = vunpack.c.l.b16 %v60
  %v142 = vunpack.c.l.b16 %v61
  %v143 = vunpack.c.l.b16 %v62
  %v144 = vpack.c.b16 %v113, %v112
  %v145 = vpack.c.b16 %v115, %v114
  %v146 = vpack.c.b16 %v117, %v116
  %v147 = vpack.c.b16 %v119, %v118
  %v148 = vpack.c.b16 %v121, %v120
  %v149 = vpack.c.b16 %v123, %v122
  %v150 = vpack.c.b16 %v125, %v124
  %v151 = vpack.c.b16 %v127, %v126
  %v152 = vpack.c.b16 %v129, %v128
  %v153 = vpack.c.b16 %v131, %v130
  %v154 = vpack.c.b16 %v133, %v132
  %v155 = vpack.c.b16 %v135, %v134
  %v156 = vpack.c.b16 %v137, %v136
  %v157 = vpack.c.b16 %v139, %v138
  %v158 = vpack.c.b16 %v141, %v140
  %v159 = vpack.c.b16 %v143, %v142
  %176 = vmatprep.subr.bf16.mxu0 0
  %177 = vmatpush1.bf16.msra.mxu0 %v144
  %178 = vmatprep.subr.bf16.mxu0 0
  %179 = vmatpush1.bf16.msra.mxu0 %v145
  %180 = vmatprep.subr.bf16.mxu0 0
  %181 = vmatpush1.bf16.msra.mxu0 %v146
  %182 = vmatprep.subr.bf16.mxu0 0
  %183 = vmatpush1.bf16.msra.mxu0 %v147
  %184 = vmatprep.subr.bf16.mxu0 0
  %185 = vmatpush1.bf16.msra.mxu0 %v148
  %186 = vmatprep.subr.bf16.mxu0 0
  %187 = vmatpush1.bf16.msra.mxu0 %v149
  %188 = vmatprep.subr.bf16.mxu0 0
  %189 = vmatpush1.bf16.msra.mxu0 %v150
  %190 = vmatprep.subr.bf16.mxu0 0
  %191 = vmatpush1.bf16.msra.mxu0 %v151
  %192 = vmatprep.subr.bf16.mxu0 0
  %193 = vmatpush1.bf16.msra.mxu0 %v152
  %194 = vmatprep.subr.bf16.mxu0 0
  %195 = vmatpush1.bf16.msra.mxu0 %v153
  %196 = vmatprep.subr.bf16.mxu0 0
  %197 = vmatpush1.bf16.msra.mxu0 %v154
  %198 = vmatprep.subr.bf16.mxu0 0
  %199 = vmatpush1.bf16.msra.mxu0 %v155
  %200 = vmatprep.subr.bf16.mxu0 0
  %201 = vmatpush1.bf16.msra.mxu0 %v156
  %202 = vmatprep.subr.bf16.mxu0 0
  %203 = vmatpush1.bf16.msra.mxu0 %v157
  %204 = vmatprep.subr.bf16.mxu0 0
  %205 = vmatpush1.bf16.msra.mxu0 %v158
  %206 = vmatprep.subr.bf16.mxu0 0
  %207 = vmatpush1.bf16.msra.mxu0 %v159
  %208 = vmatprep.mubr.bf16.mxu0 %v73
  %209 = vmatmul.mubr.bf16.gmra.mrb[0].mxu0 %v72
  %v210 = vpop.f32.mrb[0].mxu0
  %v211 = vadd.f32 0.0, %v210
  %v212 = vpop.f32.mrb[0].mxu0
  %v213 = vpop.f32.mrb[0].mxu0
  %v214 = vadd.f32 0.0, %v213
  %v215 = vpop.f32.mrb[0].mxu0
  %216 = vmatprep.mubr.bf16.mxu0 %v75
  %217 = vmatmul.mubr.bf16.gmra.mrb[0].mxu0 %v74
  %v218 = vpop.f32.mrb[0].mxu0
  %v219 = vadd.f32 0.0, %v218
  %v220 = vpop.f32.mrb[0].mxu0
  %v221 = vpop.f32.mrb[0].mxu0
  %v222 = vpop.f32.mrb[0].mxu0
  %223 = vdwg.mxu0
  %v224 = vadd.f32 %v25, %v211
  %v225 = vadd.f32 %v26, %v214
  %v226 = vadd.f32 %v27, %v219
  %227 = vst [vmem:[#allocation2] sm:$0xff] %v224
  %228 = vst [vmem:[#allocation2 + $0x8] sm:$0xff] %v225
  %229 = vst [vmem:[#allocation2 + $0x10] sm:$0xff] %v226
  // Predicated region
  $region22: #{_lambda_.6} parent=0 // pred_check
    %p230 = pneg %p18
  $region23: #{_lambda_.6} parent=0 // pred_check_branch
    %232 = sbr.rel (%p230) target = $region25
  $region24: #{_lambda_.6} parent=0 // pred_region
    %v233 = vld [vmem:[#allocation2] sm:$0xff]
    %v234 = vld [vmem:[#allocation2 + $0x8] sm:$0xff]
    %v235 = vld [vmem:[#allocation2 + $0x10] sm:$0xff]
    %v236 = vadd.f32 %v233, %v234
    %v237 = vadd.f32 %v236, %v235
    %v238 = vrot.slane %v237, 4
    %v239 = vadd.f32 %v237, %v238
    %v240 = vrot.slane %v239, 2
    %v241 = vadd.f32 %v239, %v240
    %v242 = vrot.slane %v241, 1
    %v243 = vadd.f32 %v241, %v242
    %v244 = vmul.f32 %v243, 0.055555556
    %v245 = vmul.f32 %v233, %v233
    %v246 = vmul.f32 %v234, %v234
    %v247 = vmul.f32 %v235, %v235
    %v248 = vadd.f32 %v245, %v246
    %v249 = vadd.f32 %v248, %v247
    %v250 = vrot.slane %v249, 4
    %v251 = vadd.f32 %v249, %v250
    %v252 = vrot.slane %v251, 2
    %v253 = vadd.f32 %v251, %v252
    %v254 = vrot.slane %v253, 1
    %v255 = vadd.f32 %v253, %v254
    %v256 = vmul.f32 %v255, 0.055555556
    %v257 = vmul.f32 %v244, %v244
    %v258 = vsub.f32 %v256, %v257
    %v259 = vld [vmem:[%s2] sm:$0x1]
    %v260 = vadd.f32 %v258, 1e-05
    %v261 = vrsqrt.pop %v260
    %v262 = vmul.f32 %v259, %v261
    %v263 = vld [vmem:[%s3] sm:$0x1]
    %v264 = vmul.f32 %v244, %v262
    %v265 = vsub.f32 %v263, %v264
    %v267 = vlaneseq
    %v268 = vshrl.u32 %v267, 7
    %v269 = vsub.s32 0, %v268
    %v270 = vrot.slane %v262, %v269
    %v272 = vmul.f32 %v233, %v270
    %v273 = vmul.f32 %v234, %v270
    %v274 = vmul.f32 %v235, %v270
    %v276 = vlaneseq
    %v277 = vshrl.u32 %v276, 7
    %v278 = vsub.s32 0, %v277
    %v279 = vrot.slane %v265, %v278
    %v281 = vadd.f32 %v272, %v279
    %v282 = vadd.f32 %v273, %v279
    %v283 = vadd.f32 %v274, %v279
    %vm284 = vcmp.ge.f32.partialorder %v281, 0.0
    %vm285 = vcmp.ge.f32.partialorder %v282, 0.0
    %vm286 = vcmp.ge.f32.partialorder %v283, 0.0
    %v287 = vmul.f32 %v281, 0.2
    %v288 = vmul.f32 %v282, 0.2
    %v289 = vmul.f32 %v283, 0.2
    %v290 = vsel %vm284, %v281, %v287
    %v291 = vsel %vm285, %v282, %v288
    %v292 = vsel %vm286, %v283, %v289
    %v293 = vpack.c.bf16 %v291, %v290
    %v294 = vpack.c.bf16 %v292, %v292
    %v297 = vunpack.c.l.b16 %v293
    %v298 = vunpack.c.h.b16 %v293
    %v299 = vunpack.c.l.b16 %v294
    %v300 = vpack.c.b16 %v297, %v297
    %v301 = vpack.c.b16 %v298, %v298
    %v302 = vpack.c.b16 %v299, %v299
    %306 = vst [vmem:[%s4] sm:$0xf] %v300
    %307 = vst [vmem:[%s4 + $0x4] sm:$0xf] %v301
    %308 = vst [vmem:[%s4 + $0x8] sm:$0xf] %v302
  $region25: #{_lambda_.6} parent=0 // pred_fallthru
    _
  // Predicated region
  $region26: #{_lambda_.6} parent=0 // pred_check
    _
  $region27: #{_lambda_.6} parent=0 // pred_check_branch
    %310 = sbr.rel (0) target = $region29
  $region28: #{_lambda_.6} parent=0 // pred_region
    _
  $region29: #{_lambda_.6} parent=0 // pred_fallthru
    _
  // Predicated region
  $region30: #{_lambda_.6} parent=0 // pred_check
    _
  $region31: #{_lambda_.6} parent=0 // pred_check_branch
    %312 = sbr.rel (0) target = $region33
  $region32: #{_lambda_.6} parent=0 // pred_region
    _
  $region33: #{_lambda_.6} parent=0 // pred_fallthru
    _

// kernel: _lambda_.7
$region0: #{_lambda_.7}
  #allocation0 [shape = 'u32[]', space=smem, size = 0x4, offset = 0x4, fixed_abs, tag = 'smem constant byte address 0x4 - core index']
  #allocation1 [shape = 'u32[144,128]{1,0:T(1,128)}', space=vmem, size = 0x12000, scoped, tag = 'internal scratch']
  #allocation2 [shape = 'f32[8,128]{1,0:T(8,128)}', space=vmem, size = 0x1000, scoped, tag = 'scratch operand']
  %s0 = inlined_call_operand.vmem [shape: bf16[8,512], index: 0, kind: input, shape index: {}]
  %s1 = inlined_call_operand.vmem [shape: bf16[512,128], index: 1, kind: input, shape index: {}]
  %s2 = inlined_call_operand.vmem [shape: f32[1,128], index: 2, kind: input, shape index: {}]
  %s3 = inlined_call_operand.vmem [shape: f32[8,128], index: 3, kind: output, shape index: {}]
  %s4 = sld [smem:[#allocation0]]
  $region30: #{_lambda_.7} parent=0
    _
  %s6 = ssub.s32 1, %s4
  %s7 = scalar_select 0, %s6, %s4
  // Predicated region
  $region2: #{_lambda_.7} parent=0 // pred_check
    _
  $region3: #{_lambda_.7} parent=0 // pred_check_branch
    %9 = sbr.rel (0) target = $region5
  $region4: #{_lambda_.7} parent=0 // pred_region
    _
  $region5: #{_lambda_.7} parent=0 // pred_fallthru
    _
  // Predicated region
  $region6: #{_lambda_.7} parent=0 // pred_check
    _
  $region7: #{_lambda_.7} parent=0 // pred_check_branch
    %11 = sbr.rel (0) target = $region9
  $region8: #{_lambda_.7} parent=0 // pred_region
    _
  $region9: #{_lambda_.7} parent=0 // pred_fallthru
    _
  // Predicated region
  $region10: #{_lambda_.7} parent=0 // pred_check
    _
  $region11: #{_lambda_.7} parent=0 // pred_check_branch
    %13 = sbr.rel (0) target = $region13
  $region12: #{_lambda_.7} parent=0 // pred_region
    _
  $region13: #{_lambda_.7} parent=0 // pred_fallthru
    _
  %p15 = scmp.eq.s32.totalorder 0, 0
  // Predicated region
  $region14: #{_lambda_.7} parent=0 // pred_check
    %p16 = pneg %p15
  $region15: #{_lambda_.7} parent=0 // pred_check_branch
    %18 = sbr.rel (%p16) target = $region17
  $region16: #{_lambda_.7} parent=0 // pred_region
    %19 = vst [vmem:[#allocation2] sm:$0xff] 0.0
  $region17: #{_lambda_.7} parent=0 // pred_fallthru
    _
  %v20 = vld [vmem:[#allocation2] sm:$0xff]
  %v21 = vld [vmem:[%s0] sm:$0xff]
  %v22 = vld [vmem:[%s0 + $0x8] sm:$0xff]
  %v23 = vld [vmem:[%s1] sm:$0xf]
  %v24 = vld [vmem:[%s1 + $0x4] sm:$0xf]
  %v25 = vld [vmem:[%s1 + $0x8] sm:$0xf]
  %v26 = vld [vmem:[%s1 + $0xc] sm:$0xf]
  %v27 = vld [vmem:[%s1 + $0x10] sm:$0xf]
  %v28 = vld [vmem:[%s1 + $0x14] sm:$0xf]
  %v29 = vld [vmem:[%s1 + $0x18] sm:$0xf]
  %v30 = vld [vmem:[%s1 + $0x1c] sm:$0xf]
  %v31 = vld [vmem:[%s1 + $0x20] sm:$0xf]
  %v32 = vld [vmem:[%s1 + $0x24] sm:$0xf]
  %v33 = vld [vmem:[%s1 + $0x28] sm:$0xf]
  %v34 = vld [vmem:[%s1 + $0x2c] sm:$0xf]
  %v35 = vld [vmem:[%s1 + $0x30] sm:$0xf]
  %v36 = vld [vmem:[%s1 + $0x34] sm:$0xf]
  %v37 = vld [vmem:[%s1 + $0x38] sm:$0xf]
  %v38 = vld [vmem:[%s1 + $0x3c] sm:$0xf]
  %v39 = vld [vmem:[%s1 + $0x40] sm:$0xf]
  %v40 = vld [vmem:[%s1 + $0x44] sm:$0xf]
  %v41 = vld [vmem:[%s1 + $0x48] sm:$0xf]
  %v42 = vld [vmem:[%s1 + $0x4c] sm:$0xf]
  %v43 = vld [vmem:[%s1 + $0x50] sm:$0xf]
  %v44 = vld [vmem:[%s1 + $0x54] sm:$0xf]
  %v45 = vld [vmem:[%s1 + $0x58] sm:$0xf]
  %v46 = vld [vmem:[%s1 + $0x5c] sm:$0xf]
  %v47 = vld [vmem:[%s1 + $0x60] sm:$0xf]
  %v48 = vld [vmem:[%s1 + $0x64] sm:$0xf]
  %v49 = vld [vmem:[%s1 + $0x68] sm:$0xf]
  %v50 = vld [vmem:[%s1 + $0x6c] sm:$0xf]
  %v51 = vld [vmem:[%s1 + $0x70] sm:$0xf]
  %v52 = vld [vmem:[%s1 + $0x74] sm:$0xf]
  %v53 = vld [vmem:[%s1 + $0x78] sm:$0xf]
  %v54 = vld [vmem:[%s1 + $0x7c] sm:$0xf]
  %v55 = vld [vmem:[%s1 + $0x80] sm:$0xf]
  %v56 = vld [vmem:[%s1 + $0x84] sm:$0xf]
  %v57 = vld [vmem:[%s1 + $0x88] sm:$0xf]
  %v58 = vld [vmem:[%s1 + $0x8c] sm:$0xf]
  %v59 = vld [vmem:[%s1 + $0x90] sm:$0xf]
  %v60 = vld [vmem:[%s1 + $0x94] sm:$0xf]
  %v61 = vld [vmem:[%s1 + $0x98] sm:$0xf]
  %v62 = vld [vmem:[%s1 + $0x9c] sm:$0xf]
  %v63 = vld [vmem:[%s1 + $0xa0] sm:$0xf]
  %v64 = vld [vmem:[%s1 + $0xa4] sm:$0xf]
  %v65 = vld [vmem:[%s1 + $0xa8] sm:$0xf]
  %v66 = vld [vmem:[%s1 + $0xac] sm:$0xf]
  %v67 = vld [vmem:[%s1 + $0xb0] sm:$0xf]
  %v68 = vld [vmem:[%s1 + $0xb4] sm:$0xf]
  %v69 = vld [vmem:[%s1 + $0xb8] sm:$0xf]
  %v70 = vld [vmem:[%s1 + $0xbc] sm:$0xf]
  %v71 = vld [vmem:[%s1 + $0xc0] sm:$0xf]
  %v72 = vld [vmem:[%s1 + $0xc4] sm:$0xf]
  %v73 = vld [vmem:[%s1 + $0xc8] sm:$0xf]
  %v74 = vld [vmem:[%s1 + $0xcc] sm:$0xf]
  %v75 = vld [vmem:[%s1 + $0xd0] sm:$0xf]
  %v76 = vld [vmem:[%s1 + $0xd4] sm:$0xf]
  %v77 = vld [vmem:[%s1 + $0xd8] sm:$0xf]
  %v78 = vld [vmem:[%s1 + $0xdc] sm:$0xf]
  %v79 = vld [vmem:[%s1 + $0xe0] sm:$0xf]
  %v80 = vld [vmem:[%s1 + $0xe4] sm:$0xf]
  %v81 = vld [vmem:[%s1 + $0xe8] sm:$0xf]
  %v82 = vld [vmem:[%s1 + $0xec] sm:$0xf]
  %v83 = vld [vmem:[%s1 + $0xf0] sm:$0xf]
  %v84 = vld [vmem:[%s1 + $0xf4] sm:$0xf]
  %v85 = vld [vmem:[%s1 + $0xf8] sm:$0xf]
  %v86 = vld [vmem:[%s1 + $0xfc] sm:$0xf]
  %v89 = vunpack.c.l.b16 %v21
  %v90 = vunpack.c.h.b16 %v21
  %v91 = vunpack.c.l.b16 %v22
  %v92 = vunpack.c.h.b16 %v22
  %v93 = vpack.c.b16 %v89, %v89
  %v94 = vpack.c.b16 %v90, %v90
  %v95 = vpack.c.b16 %v91, %v91
  %v96 = vpack.c.b16 %v92, %v92
  %v165 = vunpack.c.l.b16 %v23
  %v166 = vunpack.c.l.b16 %v24
  %v167 = vunpack.c.l.b16 %v25
  %v168 = vunpack.c.l.b16 %v26
  %v169 = vunpack.c.l.b16 %v27
  %v170 = vunpack.c.l.b16 %v28
  %v171 = vunpack.c.l.b16 %v29
  %v172 = vunpack.c.l.b16 %v30
  %v173 = vunpack.c.l.b16 %v31
  %v174 = vunpack.c.l.b16 %v32
  %v175 = vunpack.c.l.b16 %v33
  %v176 = vunpack.c.l.b16 %v34
  %v177 = vunpack.c.l.b16 %v35
  %v178 = vunpack.c.l.b16 %v36
  %v179 = vunpack.c.l.b16 %v37
  %v180 = vunpack.c.l.b16 %v38
  %v181 = vunpack.c.l.b16 %v39
  %v182 = vunpack.c.l.b16 %v40
  %v183 = vunpack.c.l.b16 %v41
  %v184 = vunpack.c.l.b16 %v42
  %v185 = vunpack.c.l.b16 %v43
  %v186 = vunpack.c.l.b16 %v44
  %v187 = vunpack.c.l.b16 %v45
  %v188 = vunpack.c.l.b16 %v46
  %v189 = vunpack.c.l.b16 %v47
  %v190 = vunpack.c.l.b16 %v48
  %v191 = vunpack.c.l.b16 %v49
  %v192 = vunpack.c.l.b16 %v50
  %v193 = vunpack.c.l.b16 %v51
  %v194 = vunpack.c.l.b16 %v52
  %v195 = vunpack.c.l.b16 %v53
  %v196 = vunpack.c.l.b16 %v54
  %v197 = vunpack.c.l.b16 %v55
  %v198 = vunpack.c.l.b16 %v56
  %v199 = vunpack.c.l.b16 %v57
  %v200 = vunpack.c.l.b16 %v58
  %v201 = vunpack.c.l.b16 %v59
  %v202 = vunpack.c.l.b16 %v60
  %v203 = vunpack.c.l.b16 %v61
  %v204 = vunpack.c.l.b16 %v62
  %v205 = vunpack.c.l.b16 %v63
  %v206 = vunpack.c.l.b16 %v64
  %v207 = vunpack.c.l.b16 %v65
  %v208 = vunpack.c.l.b16 %v66
  %v209 = vunpack.c.l.b16 %v67
  %v210 = vunpack.c.l.b16 %v68
  %v211 = vunpack.c.l.b16 %v69
  %v212 = vunpack.c.l.b16 %v70
  %v213 = vunpack.c.l.b16 %v71
  %v214 = vunpack.c.l.b16 %v72
  %v215 = vunpack.c.l.b16 %v73
  %v216 = vunpack.c.l.b16 %v74
  %v217 = vunpack.c.l.b16 %v75
  %v218 = vunpack.c.l.b16 %v76
  %v219 = vunpack.c.l.b16 %v77
  %v220 = vunpack.c.l.b16 %v78
  %v221 = vunpack.c.l.b16 %v79
  %v222 = vunpack.c.l.b16 %v80
  %v223 = vunpack.c.l.b16 %v81
  %v224 = vunpack.c.l.b16 %v82
  %v225 = vunpack.c.l.b16 %v83
  %v226 = vunpack.c.l.b16 %v84
  %v227 = vunpack.c.l.b16 %v85
  %v228 = vunpack.c.l.b16 %v86
  %v229 = vpack.c.b16 %v166, %v165
  %v230 = vpack.c.b16 %v168, %v167
  %v231 = vpack.c.b16 %v170, %v169
  %v232 = vpack.c.b16 %v172, %v171
  %v233 = vpack.c.b16 %v174, %v173
  %v234 = vpack.c.b16 %v176, %v175
  %v235 = vpack.c.b16 %v178, %v177
  %v236 = vpack.c.b16 %v180, %v179
  %v237 = vpack.c.b16 %v182, %v181
  %v238 = vpack.c.b16 %v184, %v183
  %v239 = vpack.c.b16 %v186, %v185
  %v240 = vpack.c.b16 %v188, %v187
  %v241 = vpack.c.b16 %v190, %v189
  %v242 = vpack.c.b16 %v192, %v191
  %v243 = vpack.c.b16 %v194, %v193
  %v244 = vpack.c.b16 %v196, %v195
  %v245 = vpack.c.b16 %v198, %v197
  %v246 = vpack.c.b16 %v200, %v199
  %v247 = vpack.c.b16 %v202, %v201
  %v248 = vpack.c.b16 %v204, %v203
  %v249 = vpack.c.b16 %v206, %v205
  %v250 = vpack.c.b16 %v208, %v207
  %v251 = vpack.c.b16 %v210, %v209
  %v252 = vpack.c.b16 %v212, %v211
  %v253 = vpack.c.b16 %v214, %v213
  %v254 = vpack.c.b16 %v216, %v215
  %v255 = vpack.c.b16 %v218, %v217
  %v256 = vpack.c.b16 %v220, %v219
  %v257 = vpack.c.b16 %v222, %v221
  %v258 = vpack.c.b16 %v224, %v223
  %v259 = vpack.c.b16 %v226, %v225
  %v260 = vpack.c.b16 %v228, %v227
  %293 = vmatprep.subr.bf16.mxu0 0
  %294 = vmatpush1.bf16.msra.mxu0 %v229
  %295 = vmatprep.subr.bf16.mxu0 0
  %296 = vmatpush1.bf16.msra.mxu0 %v230
  %297 = vmatprep.subr.bf16.mxu0 0
  %298 = vmatpush1.bf16.msra.mxu0 %v231
  %299 = vmatprep.subr.bf16.mxu0 0
  %300 = vmatpush1.bf16.msra.mxu0 %v232
  %301 = vmatprep.subr.bf16.mxu0 0
  %302 = vmatpush1.bf16.msra.mxu0 %v233
  %303 = vmatprep.subr.bf16.mxu0 0
  %304 = vmatpush1.bf16.msra.mxu0 %v234
  %305 = vmatprep.subr.bf16.mxu0 0
  %306 = vmatpush1.bf16.msra.mxu0 %v235
  %307 = vmatprep.subr.bf16.mxu0 0
  %308 = vmatpush1.bf16.msra.mxu0 %v236
  %309 = vmatprep.subr.bf16.mxu0 0
  %310 = vmatpush1.bf16.msra.mxu0 %v237
  %311 = vmatprep.subr.bf16.mxu0 0
  %312 = vmatpush1.bf16.msra.mxu0 %v238
  %313 = vmatprep.subr.bf16.mxu0 0
  %314 = vmatpush1.bf16.msra.mxu0 %v239
  %315 = vmatprep.subr.bf16.mxu0 0
  %316 = vmatpush1.bf16.msra.mxu0 %v240
  %317 = vmatprep.subr.bf16.mxu0 0
  %318 = vmatpush1.bf16.msra.mxu0 %v241
  %319 = vmatprep.subr.bf16.mxu0 0
  %320 = vmatpush1.bf16.msra.mxu0 %v242
  %321 = vmatprep.subr.bf16.mxu0 0
  %322 = vmatpush1.bf16.msra.mxu0 %v243
  %323 = vmatprep.subr.bf16.mxu0 0
  %324 = vmatpush1.bf16.msra.mxu0 %v244
  %325 = vmatprep.mubr.bf16.mxu0 %v94
  %326 = vmatmul.mubr.bf16.gmra.mrb[0].mxu0 %v93
  %v327 = vpop.f32.mrb[0].mxu0
  %v328 = vadd.f32 0.0, %v327
  %v329 = vpop.f32.mrb[0].mxu0
  %v330 = vpop.f32.mrb[0].mxu0
  %v331 = vpop.f32.mrb[0].mxu0
  %332 = vdwg.mxu0
  %333 = vmatprep.subr.bf16.mxu0 0
  %334 = vmatpush1.bf16.msra.mxu0 %v245
  %335 = vmatprep.subr.bf16.mxu0 0
  %336 = vmatpush1.bf16.msra.mxu0 %v246
  %337 = vmatprep.subr.bf16.mxu0 0
  %338 = vmatpush1.bf16.msra.mxu0 %v247
  %339 = vmatprep.subr.bf16.mxu0 0
  %340 = vmatpush1.bf16.msra.mxu0 %v248
  %341 = vmatprep.subr.bf16.mxu0 0
  %342 = vmatpush1.bf16.msra.mxu0 %v249
  %343 = vmatprep.subr.bf16.mxu0 0
  %344 = vmatpush1.bf16.msra.mxu0 %v250
  %345 = vmatprep.subr.bf16.mxu0 0
  %346 = vmatpush1.bf16.msra.mxu0 %v251
  %347 = vmatprep.subr.bf16.mxu0 0
  %348 = vmatpush1.bf16.msra.mxu0 %v252
  %349 = vmatprep.subr.bf16.mxu0 0
  %350 = vmatpush1.bf16.msra.mxu0 %v253
  %351 = vmatprep.subr.bf16.mxu0 0
  %352 = vmatpush1.bf16.msra.mxu0 %v254
  %353 = vmatprep.subr.bf16.mxu0 0
  %354 = vmatpush1.bf16.msra.mxu0 %v255
  %355 = vmatprep.subr.bf16.mxu0 0
  %356 = vmatpush1.bf16.msra.mxu0 %v256
  %357 = vmatprep.subr.bf16.mxu0 0
  %358 = vmatpush1.bf16.msra.mxu0 %v257
  %359 = vmatprep.subr.bf16.mxu0 0
  %360 = vmatpush1.bf16.msra.mxu0 %v258
  %361 = vmatprep.subr.bf16.mxu0 0
  %362 = vmatpush1.bf16.msra.mxu0 %v259
  %363 = vmatprep.subr.bf16.mxu0 0
  %364 = vmatpush1.bf16.msra.mxu0 %v260
  %365 = vmatprep.mubr.bf16.mxu0 %v96
  %366 = vmatmul.mubr.bf16.gmra.mrb[0].mxu0 %v95
  %v367 = vpop.f32.mrb[0].mxu0
  %v368 = vadd.f32 %v328, %v367
  %v369 = vpop.f32.mrb[0].mxu0
  %v370 = vpop.f32.mrb[0].mxu0
  %v371 = vpop.f32.mrb[0].mxu0
  %372 = vdwg.mxu0
  %v373 = vadd.f32 %v20, %v368
  %374 = vst [vmem:[#allocation2] sm:$0xff] %v373
  // Predicated region
  $region18: #{_lambda_.7} parent=0 // pred_check
    %p375 = pneg %p15
  $region19: #{_lambda_.7} parent=0 // pred_check_branch
    %377 = sbr.rel (%p375) target = $region21
  $region20: #{_lambda_.7} parent=0 // pred_region
    %v378 = vld [vmem:[#allocation2] sm:$0xff]
    %v379 = vld [vmem:[%s2] sm:$0x1]
    %v381 = vlaneseq
    %v382 = vshrl.u32 %v381, 7
    %v383 = vsub.s32 0, %v382
    %v384 = vrot.slane %v379, %v383
    %v386 = vadd.f32 %v378, %v384
    %387 = vst [vmem:[%s3] sm:$0xff] %v386
  $region21: #{_lambda_.7} parent=0 // pred_fallthru
    _
  // Predicated region
  $region22: #{_lambda_.7} parent=0 // pred_check
    _
  $region23: #{_lambda_.7} parent=0 // pred_check_branch
    %389 = sbr.rel (0) target = $region25
  $region24: #{_lambda_.7} parent=0 // pred_region
    _
  $region25: #{_lambda_.7} parent=0 // pred_fallthru
    _
  // Predicated region
  $region26: #{_lambda_.7} parent=0 // pred_check
    _
  $region27: #{_lambda_.7} parent=0 // pred_check_branch
    %391 = sbr.rel (0) target = $region29
  $region28: #{_lambda_.7} parent=0 // pred_region
    _
  $region29: #{_lambda_.7} parent=0 // pred_fallthru
    _

</llo_original>
